<compile_context>
chip_gen: v6e
topology: v6e:2x2x1
jax: 0.10.0
libtpu: 0.0.40
codegen_flags: <defaults>
</compile_context>

<pallas_src>
import math
import inspect
import functools

import jax
import jax.numpy as jnp
from jax.experimental import pallas as pl
from jax.experimental.pallas import tpu as pltpu


# ---------------------------------------------------------------------------
# In-kernel math helpers.
# ---------------------------------------------------------------------------
_GELU_C = math.sqrt(2.0 / math.pi)


def _gelu(x):
    # tanh-form GELU: one EUP transcendental instead of a ~12-op VALU polynomial.
    # TODO(synk): torch reference uses exact erf; |tanh-gelu - erf-gelu| <= ~3e-3,
    #             below this kernel's bf16 matmul noise.
    return 0.5 * x * (1.0 + jnp.tanh(_GELU_C * (x + 0.044715 * x * x * x)))


def _layernorm(x, gamma, beta, eps):
    mu = jnp.mean(x, axis=-1, keepdims=True)
    d = x - mu
    var = jnp.mean(d * d, axis=-1, keepdims=True)
    # rsqrt -> EUP slot instead of VALU divide.
    return d * jax.lax.rsqrt(var + eps) * gamma + beta


def _softmax_axis0(x):
    # nn.Softmax(dim=-2) on a 2-D [S, K] tile -> softmax over rows (axis 0).
    m = jnp.max(x, axis=0, keepdims=True)
    e = jnp.exp(x - m)
    # approx reciprocal -> EUP slot; error well below bf16 matmul noise.
    return e * pl.reciprocal(jnp.sum(e, axis=0, keepdims=True), approx=True)


# ---------------------------------------------------------------------------
# Batch-invariant positional bias: computed once per layer, stored bf16.
#   bias[h] = softmax_dim=-2( (LN(pos) Wpq + bpq) * pos_scaling)_h
#                            @ ((LN(pos) Wpk + bpk))_h^T / sqrt(dh) )
# ---------------------------------------------------------------------------
def _pos_bias_kernel(pos_ref, g_ref, b_ref, wpq_ref, bpq_ref, wpk_ref, bpk_ref,
                     bias_ref, *, n_heads, head_size, eps, mm_dtype):
    f32 = jnp.float32
    pos_n = _layernorm(pos_ref[...].astype(f32), g_ref[...], b_ref[...], eps)
    pos_nm = pos_n.astype(mm_dtype)
    pos_scaling = float(head_size * 2) ** (-0.5)
    pq = ((jnp.dot(pos_nm, wpq_ref[...], preferred_element_type=f32)
           + bpq_ref[...]) * pos_scaling).astype(mm_dtype)              # [S, H]
    pk = (jnp.dot(pos_nm, wpk_ref[...], preferred_element_type=f32)
          + bpk_ref[...]).astype(mm_dtype)                              # [S, H]
    inv_sqrt_dh = 1.0 / math.sqrt(head_size)
    for h in range(n_heads):
        sl = slice(h * head_size, (h + 1) * head_size)
        scores = jax.lax.dot_general(pq[:, sl], pk[:, sl],
                                     (((1,), (1,)), ((), ())),
                                     preferred_element_type=f32) * inv_sqrt_dh
        bias_ref[h] = _softmax_axis0(scores).astype(bias_ref.dtype)


# ---------------------------------------------------------------------------
# Main layer kernel: one grid step == Bt batch rows (flattened to [Bt*S, H]).
# ---------------------------------------------------------------------------
def _layer_kernel(
    x_ref, bias_ref,
    wq_ref, bq_ref, wk_ref, bk_ref, wv_ref, bv_ref,
    theta_k_ref, theta_v_ref,
    wd_ref, bd_ref, ln1_g_ref, ln1_b_ref,
    w1_ref, b1_ref, w2_ref, b2_ref, ln2_g_ref, ln2_b_ref,
    out_ref,
    *, n_heads, head_size, seq_len, batch_tile, eps, mm_dtype,
):
    f32 = jnp.float32
    xm = x_ref[...].astype(mm_dtype)               # [Rt, H] bf16 matmul operand

    def proj(inp, w_ref, b_ref):
        # f32 MXU accumulation; keep the activation bf16 (only consumed by matmuls).
        return (jnp.dot(inp, w_ref[...], preferred_element_type=f32)
                + b_ref[...]).astype(mm_dtype)

    # --- QKV projections on the full [Bt*S, H] tile (fills MXU rows) ----------
    q = proj(xm, wq_ref, bq_ref)
    k = proj(xm, wk_ref, bk_ref)
    v = proj(xm, wv_ref, bv_ref)

    # --- ItemToInterestAggregation D matrices: hoisted to full-tile matmuls ---
    dk_all = jnp.dot(k, theta_k_ref[...], preferred_element_type=f32)   # [Rt, kI]
    dv_all = jnp.dot(v, theta_v_ref[...], preferred_element_type=f32)

    inv_sqrt_dh = 1.0 / math.sqrt(head_size)

    # Per-batch pooled keys / values ([kI, H], tiny); softmax(dim=-2) acts over
    # the S rows of each batch block.
    pooled_k, pooled_v = [], []
    for b in range(batch_tile):
        rows = slice(b * seq_len, (b + 1) * seq_len)
        dk_b = _softmax_axis0(dk_all[rows]).astype(mm_dtype)            # [S, kI]
        dv_b = _softmax_axis0(dv_all[rows]).astype(mm_dtype)
        pooled_k.append(jax.lax.dot_general(
            dk_b, k[rows], (((0,), (0,)), ((), ())),
            preferred_element_type=f32).astype(mm_dtype))               # [kI, H]
        pooled_v.append(jax.lax.dot_general(
            dv_b, v[rows], (((0,), (0,)), ((), ())),
            preferred_element_type=f32).astype(mm_dtype))

    # --- attention middle section: head-outer so bias[h] is loaded once per head;
    #     results are assembled into one lane-dense [Rt, H] value (no masked stores).
    # TODO(synk): for large batch_tile*n_heads switch the b-loop to lax.fori_loop
    #             with a ctx VMEM scratch to bound unrolled code size / live ranges.
    ctx_heads = []
    for h in range(n_heads):
        sl = slice(h * head_size, (h + 1) * head_size)
        bias_h = bias_ref[h]                       # [S, S] bf16, loaded once per head
        q_h = q[:, sl]                             # [Rt, dh] bf16
        v_h = v[:, sl]
        chunks = []
        for b in range(batch_tile):
            rows = slice(b * seq_len, (b + 1) * seq_len)
            scores = jax.lax.dot_general(
                q_h[rows], pooled_k[b][:, sl], (((1,), (1,)), ((), ())),
                preferred_element_type=f32) * inv_sqrt_dh               # [S, kI]
            probs = _softmax_axis0(scores).astype(mm_dtype)             # softmax over seq
            ctx_item = jnp.dot(probs, pooled_v[b][:, sl],
                               preferred_element_type=f32)              # [S, dh]
            ctx_pos = jnp.dot(bias_h, v_h[rows],
                              preferred_element_type=f32)               # [S, dh]
            chunks.append(ctx_item + ctx_pos)
        ctx_heads.append(jnp.concatenate(chunks, axis=0)
                         if batch_tile > 1 else chunks[0])              # [Rt, dh]
    ctx = (jnp.concatenate(ctx_heads, axis=-1)
           if n_heads > 1 else ctx_heads[0])                            # [Rt, H] f32

    # --- fused output projection (single K = H matmul) + residual LayerNorm ---
    x_res = x_ref[...].astype(f32)                 # re-load x; not kept live above
    attn = jnp.dot(ctx.astype(mm_dtype), wd_ref[...],
                   preferred_element_type=f32) + bd_ref[...]
    attn = _layernorm(attn + x_res, ln1_g_ref[...], ln1_b_ref[...], eps)

    # --- FeedForward -----------------------------------------------------------
    h1 = _gelu(jnp.dot(attn.astype(mm_dtype), w1_ref[...],
                       preferred_element_type=f32) + b1_ref[...])
    h2 = jnp.dot(h1.astype(mm_dtype), w2_ref[...],
                 preferred_element_type=f32) + b2_ref[...]
    out = _layernorm(h2 + attn, ln2_g_ref[...], ln2_b_ref[...], eps)

    out_ref[...] = out.astype(out_ref.dtype)


# ---------------------------------------------------------------------------
# Wrappers
# ---------------------------------------------------------------------------
_MM_WEIGHTS = ("wq", "wk", "wv", "theta_k", "theta_v", "wd", "w1", "w2")

_MAIN_PARAM_ORDER = (
    "wq", "bq", "wk", "bk", "wv", "bv",
    "theta_k", "theta_v",
    "wd", "bd", "ln1_g", "ln1_b",
    "w1", "b1", "w2", "b2", "ln2_g", "ln2_b",
)


@functools.lru_cache(maxsize=None)
def _device_kind():
    try:
        return jax.devices()[0].device_kind.lower()
    except Exception:
        return ""


@functools.lru_cache(maxsize=None)
def _vmem_limit_bytes():
    """Generation-aware scoped-VMEM cap: ~75% of physical, never above 96 MiB."""
    cap = 128 * 1024 * 1024
    try:
        cap = int(getattr(pltpu.get_tpu_info(), "vmem_capacity_bytes", cap))
    except Exception:
        pass
    return max(32 * 1024 * 1024, min(cap * 3 // 4, 96 * 1024 * 1024))


def _supports_buffered():
    if not hasattr(pl, "Buffered"):
        return False
    try:
        return "pipeline_mode" in inspect.signature(pl.BlockSpec).parameters
    except (TypeError, ValueError):
        return False


_STATE = {"single_buffer_consts": _supports_buffered()}


def _const_spec(arr):
    """Whole-array, constant-block-index input (weights / pos bias) on a 1-D grid.
    Single-buffered when supported (halves resident weight VMEM, matters on v7x)."""
    idx = lambda i, _n=arr.ndim: (0,) * _n
    if _STATE["single_buffer_consts"]:
        return pl.BlockSpec(arr.shape, idx, pipeline_mode=pl.Buffered(1))
    return pl.BlockSpec(arr.shape, idx)


def _run_with_fallback(run):
    """Build+invoke a pallas_call; if single-buffered const specs are rejected by
    this jax/Mosaic version, retry once with default (double-buffered) specs."""
    try:
        return run()
    except Exception:
        if not _STATE["single_buffer_consts"]:
            raise
        _STATE["single_buffer_consts"] = False
        return run()


def _choose_batch_tile(B, S, *, max_tile=8):
    """Pick Bt so Bt*S approaches the MXU row count of this generation; only shrink
    for >=2 grid steps on multi-TensorCore chips (grid 'parallel' is sharded there)."""
    kind = _device_kind()
    target_rows = 128 if ("v5 lite" in kind or "v5e" in kind or
                          ("v5" in kind and "p" not in kind)) else 256
    multi_tc = any(t in kind for t in ("v7", "v5p", "v4"))
    bt = max(1, min(B, max_tile, max(1, target_rows // max(S, 1))))
    if multi_tc:
        while bt > 1 and B // bt < 2:
            bt -= 1
    while B % bt != 0:
        bt -= 1
    return bt


def _compute_pos_bias(pos_emb, params, *, n_heads, head_size, eps, mm_dtype):
    S, H = pos_emb.shape
    f32 = jnp.float32
    args = [pos_emb.astype(f32),
            params["posln_g"].astype(f32), params["posln_b"].astype(f32),
            params["wpq"].astype(mm_dtype), params["bpq"].astype(f32),
            params["wpk"].astype(mm_dtype), params["bpk"].astype(f32)]
    kernel = functools.partial(_pos_bias_kernel, n_heads=n_heads,
                               head_size=head_size, eps=eps, mm_dtype=mm_dtype)

    def run():
        return pl.pallas_call(
            kernel,
            out_shape=jax.ShapeDtypeStruct((n_heads, S, S), mm_dtype),
            grid_spec=pltpu.PrefetchScalarGridSpec(
                num_scalar_prefetch=0,
                grid=(1,),
                in_specs=[_const_spec(a) for a in args],
                out_specs=pl.BlockSpec((n_heads, S, S), lambda i: (0, 0, 0)),
            ),
            compiler_params=pltpu.CompilerParams(
                dimension_semantics=("arbitrary",),
                vmem_limit_bytes=_vmem_limit_bytes()),
        )(*args)

    return _run_with_fallback(run)


def light_layer_forward(x, pos_emb, params, *, n_heads, eps=1e-12,
                        mm_dtype=jnp.bfloat16, batch_tile=None):
    B, S, H = x.shape
    assert H % n_heads == 0
    head_size = H // n_heads
    bt = batch_tile if batch_tile is not None else _choose_batch_tile(B, S)
    assert B % bt == 0
    rows = bt * S

    # Batch-invariant positional bias, computed once per layer (bf16).
    pos_bias = _compute_pos_bias(pos_emb, params, n_heads=n_heads,
                                 head_size=head_size, eps=eps, mm_dtype=mm_dtype)

    def cast(name):
        p = params[name]
        return p.astype(mm_dtype) if name in _MM_WEIGHTS else p.astype(jnp.float32)

    param_list = [cast(name) for name in _MAIN_PARAM_ORDER]
    x2d = x.reshape(B * S, H)

    kernel = functools.partial(
        _layer_kernel, n_heads=n_heads, head_size=head_size,
        seq_len=S, batch_tile=bt, eps=eps, mm_dtype=mm_dtype)

    def run():
        in_specs = ([pl.BlockSpec((rows, H), lambda i: (i, 0)),   # Bt batch rows
                     _const_spec(pos_bias)]                       # shared pos bias
                    + [_const_spec(a) for a in param_list])
        return pl.pallas_call(
            kernel,
            out_shape=jax.ShapeDtypeStruct((B * S, H), x.dtype),
            grid_spec=pltpu.PrefetchScalarGridSpec(
                num_scalar_prefetch=0,
                grid=(B // bt,),
                in_specs=in_specs,
                out_specs=pl.BlockSpec((rows, H), lambda i: (i, 0)),
            ),
            compiler_params=pltpu.CompilerParams(
                dimension_semantics=("parallel",),
                vmem_limit_bytes=_vmem_limit_bytes()),
        )(x2d, pos_bias, *param_list)

    out2d = _run_with_fallback(run)
    return out2d.reshape(B, S, H)


def light_transformer_encoder(x, pos_emb, layer_params, *, n_heads,
                              output_all_encoded_layers=True,
                              mm_dtype=jnp.bfloat16):
    all_layers = []
    h = x
    for p in layer_params:
        h = light_layer_forward(h, pos_emb, p, n_heads=n_heads, mm_dtype=mm_dtype)
        if output_all_encoded_layers:
            all_layers.append(h)
    if not output_all_encoded_layers:
        all_layers.append(h)
    return all_layers


# ---------------------------------------------------------------------------
# Deterministic synthetic parameter init (shapes follow the module __init__).
# ---------------------------------------------------------------------------
def init_layer_params(key, hidden_size, inner_size, k_interests):
    keys = iter(jax.random.split(key, 32))
    H, I = hidden_size, inner_size

    def lin(din, dout):
        w = jax.random.normal(next(keys), (din, dout), jnp.float32) / math.sqrt(din)
        b = jax.random.normal(next(keys), (1, dout), jnp.float32) * 0.02
        return w, b

    p = {}
    p["wq"], p["bq"] = lin(H, H)
    p["wk"], p["bk"] = lin(H, H)
    p["wv"], p["bv"] = lin(H, H)
    p["theta_k"] = jax.random.normal(next(keys), (H, k_interests), jnp.float32)
    p["theta_v"] = jax.random.normal(next(keys), (H, k_interests), jnp.float32)
    p["wpq"], p["bpq"] = lin(H, H)
    p["wpk"], p["bpk"] = lin(H, H)
    p["posln_g"] = jnp.ones((1, H), jnp.float32)
    p["posln_b"] = jnp.zeros((1, H), jnp.float32)
    p["wd"], p["bd"] = lin(H, H)
    p["ln1_g"] = jnp.ones((1, H), jnp.float32)
    p["ln1_b"] = jnp.zeros((1, H), jnp.float32)
    p["w1"], p["b1"] = lin(H, I)
    p["w2"], p["b2"] = lin(I, H)
    p["ln2_g"] = jnp.ones((1, H), jnp.float32)
    p["ln2_b"] = jnp.zeros((1, H), jnp.float32)
    return p


# ---------------------------------------------------------------------------
# Pure-JAX f32 reference of LightTransformerLayer.forward (eval mode), for a
# tolerance-based check of the bf16 Pallas kernel.
# ---------------------------------------------------------------------------
def _reference_layer(x, pos_emb, p, *, n_heads, eps):
    B, S, H = x.shape
    dh = H // n_heads

    def split_heads(t):
        return t.reshape(t.shape[0], t.shape[1], n_heads, dh).transpose(0, 2, 1, 3)

    def ln(t, g, b):
        mu = jnp.mean(t, axis=-1, keepdims=True)
        var = jnp.mean((t - mu) ** 2, axis=-1, keepdims=True)
        return (t - mu) / jnp.sqrt(var + eps) * g + b

    q = x @ p["wq"] + p["bq"]
    k = x @ p["wk"] + p["bk"]
    v = x @ p["wv"] + p["bv"]

    def pool(t, theta):
        d = jax.nn.softmax(t @ theta, axis=-2)
        return jnp.einsum("bij,bik->bkj", t, d)

    ql = split_heads(q)
    kl = split_heads(pool(k, p["theta_k"]))
    vl = split_heads(pool(v, p["theta_v"]))
    scores = (ql @ jnp.swapaxes(kl, -1, -2)) / math.sqrt(dh)
    probs = jax.nn.softmax(scores, axis=-2)
    ctx_item = probs @ vl

    v_pos = split_heads(v)
    pos_n = ln(pos_emb, p["posln_g"], p["posln_b"])[None]
    pos_scaling = float(dh * 2) ** (-0.5)
    pq = split_heads(pos_n @ p["wpq"] + p["bpq"]) * pos_scaling
    pk = split_heads(pos_n @ p["wpk"] + p["bpk"])
    bias = jax.nn.softmax((pq @ jnp.swapaxes(pk, -1, -2)) / math.sqrt(dh), axis=-2)
    ctx_pos = bias @ v_pos

    ctx = (ctx_item + ctx_pos).transpose(0, 2, 1, 3).reshape(B, S, H)
    attn = ln(ctx @ p["wd"] + p["bd"] + x, p["ln1_g"], p["ln1_b"])
    h1 = attn @ p["w1"] + p["b1"]
    h1 = h1 * 0.5 * (1.0 + jax.lax.erf(h1 / math.sqrt(2.0)))
    h2 = h1 @ p["w2"] + p["b2"]
    return ln(h2 + attn, p["ln2_g"], p["ln2_b"])


if __name__ == "__main__":
    # Small shapes consistent with the module's forward:
    # hidden_states [B, S, H], pos_emb [S, H]
    B, S, H = 2, 8, 32
    n_layers, n_heads, k_interests, inner_size = 2, 2, 5, 64

    key = jax.random.PRNGKey(0)
    kx, kp, kparams = jax.random.split(key, 3)
    x = jax.random.normal(kx, (B, S, H), jnp.float32)
    pos_emb = jax.random.normal(kp, (S, H), jnp.float32)

    layer_keys = jax.random.split(kparams, n_layers)
    layer_params = [init_layer_params(k, H, inner_size, k_interests)
                    for k in layer_keys]

    outs = light_transformer_encoder(
        x, pos_emb, layer_params, n_heads=n_heads,
        output_all_encoded_layers=True)
    for o in outs:
        jax.block_until_ready(o)
    assert len(outs) == n_layers and outs[-1].shape == (B, S, H)

    # Tolerance check vs. the f32 reference (bf16 matmuls + tanh-gelu + approx
    # reciprocal => small, bounded deviation).
    h_ref = x
    for p in layer_params:
        h_ref = _reference_layer(h_ref, pos_emb, p, n_heads=n_heads, eps=1e-12)
    max_err = float(jnp.max(jnp.abs(outs[-1] - h_ref)))
    assert max_err < 2e-1, f"kernel deviates from reference: max abs err {max_err}"

    print("KERNEL_OK")
</pallas_src>

<mosaic_0001>
module attributes {stable_mosaic.version = 11 : i64} {
  func.func @_pos_bias_kernel(%arg0: i32, %arg1: memref<8x32xf32, #tpu.memory_space<vmem>>, %arg2: memref<1x32xf32, #tpu.memory_space<vmem>>, %arg3: memref<1x32xf32, #tpu.memory_space<vmem>>, %arg4: memref<32x32xbf16, #tpu.memory_space<vmem>>, %arg5: memref<1x32xf32, #tpu.memory_space<vmem>>, %arg6: memref<32x32xbf16, #tpu.memory_space<vmem>>, %arg7: memref<1x32xf32, #tpu.memory_space<vmem>>, %arg8: memref<2x8x8xbf16, #tpu.memory_space<vmem>>) attributes {dimension_semantics = [#tpu.dimension_semantics<arbitrary>], iteration_bounds = array<i64: 1>, scalar_prefetch = 0 : i64, scratch_operands = 0 : i64, tpu.core_type = #tpu.core_type<tc>, window_params = [{pipeline_mode = #tpu.pipeline_mode<synchronous>, transform_indices = @transform_0, window_bounds = array<i64: 8, 32>}, {pipeline_mode = #tpu.pipeline_mode<synchronous>, transform_indices = @transform_1, window_bounds = array<i64: 1, 32>}, {pipeline_mode = #tpu.pipeline_mode<synchronous>, transform_indices = @transform_2, window_bounds = array<i64: 1, 32>}, {pipeline_mode = #tpu.pipeline_mode<synchronous>, transform_indices = @transform_3, window_bounds = array<i64: 32, 32>}, {pipeline_mode = #tpu.pipeline_mode<synchronous>, transform_indices = @transform_4, window_bounds = array<i64: 1, 32>}, {pipeline_mode = #tpu.pipeline_mode<synchronous>, transform_indices = @transform_5, window_bounds = array<i64: 32, 32>}, {pipeline_mode = #tpu.pipeline_mode<synchronous>, transform_indices = @transform_6, window_bounds = array<i64: 1, 32>}, {pipeline_mode = #tpu.pipeline_mode<synchronous>, transform_indices = @transform_7, window_bounds = array<i64: 2, 8, 8>}]} {
    %c0 = arith.constant 0 : index
    %c0_0 = arith.constant 0 : index
    %0 = vector.load %arg1[%c0, %c0_0] : memref<8x32xf32, #tpu.memory_space<vmem>>, vector<8x32xf32>
    %c0_1 = arith.constant 0 : index
    %c0_2 = arith.constant 0 : index
    %1 = vector.load %arg2[%c0_1, %c0_2] : memref<1x32xf32, #tpu.memory_space<vmem>>, vector<1x32xf32>
    %c0_3 = arith.constant 0 : index
    %c0_4 = arith.constant 0 : index
    %2 = vector.load %arg3[%c0_3, %c0_4] : memref<1x32xf32, #tpu.memory_space<vmem>>, vector<1x32xf32>
    %cst = arith.constant dense<0.000000e+00> : vector<8xf32>
    %3 = vector.multi_reduction <add>, %0, %cst [1] : vector<8x32xf32> to vector<8xf32>
    %4 = vector.shape_cast %3 : vector<8xf32> to vector<8x1xf32>
    %cst_5 = arith.constant 3.200000e+01 : f32
    %5 = vector.broadcast %cst_5 : f32 to vector<8x1xf32>
    %6 = arith.divf %4, %5 : vector<8x1xf32>
    %7 = vector.broadcast %6 : vector<8x1xf32> to vector<8x32xf32>
    %8 = arith.subf %0, %7 : vector<8x32xf32>
    %9 = arith.mulf %8, %8 : vector<8x32xf32>
    %cst_6 = arith.constant dense<0.000000e+00> : vector<8xf32>
    %10 = vector.multi_reduction <add>, %9, %cst_6 [1] : vector<8x32xf32> to vector<8xf32>
    %11 = vector.shape_cast %10 : vector<8xf32> to vector<8x1xf32>
    %cst_7 = arith.constant 3.200000e+01 : f32
    %12 = vector.broadcast %cst_7 : f32 to vector<8x1xf32>
    %13 = arith.divf %11, %12 : vector<8x1xf32>
    %cst_8 = arith.constant 9.99999996E-13 : f32
    %14 = vector.broadcast %cst_8 : f32 to vector<8x1xf32>
    %15 = arith.addf %13, %14 : vector<8x1xf32>
    %16 = math.rsqrt %15 : vector<8x1xf32>
    %17 = vector.broadcast %16 : vector<8x1xf32> to vector<8x32xf32>
    %18 = arith.mulf %8, %17 : vector<8x32xf32>
    %19 = vector.broadcast %1 : vector<1x32xf32> to vector<8x32xf32>
    %20 = arith.mulf %18, %19 : vector<8x32xf32>
    %21 = vector.broadcast %2 : vector<1x32xf32> to vector<8x32xf32>
    %22 = arith.addf %20, %21 : vector<8x32xf32>
    %23 = arith.truncf %22 : vector<8x32xf32> to vector<8x32xbf16>
    %c0_9 = arith.constant 0 : index
    %c0_10 = arith.constant 0 : index
    %24 = vector.load %arg4[%c0_9, %c0_10] : memref<32x32xbf16, #tpu.memory_space<vmem>>, vector<32x32xbf16>
    %cst_11 = arith.constant dense<0.000000e+00> : vector<8x32xf32>
    %25 = tpu.matmul %23, %24, %cst_11 {dimension_numbers = #tpu.dot_dimension_numbers<[1], [0], [0], [1], [0, 0, 1, 1], [], []>} : vector<8x32xbf16>, vector<32x32xbf16>, vector<8x32xf32> -> vector<8x32xf32>
    %c0_12 = arith.constant 0 : index
    %c0_13 = arith.constant 0 : index
    %26 = vector.load %arg5[%c0_12, %c0_13] : memref<1x32xf32, #tpu.memory_space<vmem>>, vector<1x32xf32>
    %27 = vector.broadcast %26 : vector<1x32xf32> to vector<8x32xf32>
    %28 = arith.addf %25, %27 : vector<8x32xf32>
    %cst_14 = arith.constant 0.176776692 : f32
    %29 = vector.broadcast %cst_14 : f32 to vector<8x32xf32>
    %30 = arith.mulf %28, %29 : vector<8x32xf32>
    %31 = arith.truncf %30 : vector<8x32xf32> to vector<8x32xbf16>
    %c0_15 = arith.constant 0 : index
    %c0_16 = arith.constant 0 : index
    %32 = vector.load %arg6[%c0_15, %c0_16] : memref<32x32xbf16, #tpu.memory_space<vmem>>, vector<32x32xbf16>
    %cst_17 = arith.constant dense<0.000000e+00> : vector<8x32xf32>
    %33 = tpu.matmul %23, %32, %cst_17 {dimension_numbers = #tpu.dot_dimension_numbers<[1], [0], [0], [1], [0, 0, 1, 1], [], []>} : vector<8x32xbf16>, vector<32x32xbf16>, vector<8x32xf32> -> vector<8x32xf32>
    %c0_18 = arith.constant 0 : index
    %c0_19 = arith.constant 0 : index
    %34 = vector.load %arg7[%c0_18, %c0_19] : memref<1x32xf32, #tpu.memory_space<vmem>>, vector<1x32xf32>
    %35 = vector.broadcast %34 : vector<1x32xf32> to vector<8x32xf32>
    %36 = arith.addf %33, %35 : vector<8x32xf32>
    %37 = arith.truncf %36 : vector<8x32xf32> to vector<8x32xbf16>
    %38 = vector.extract_strided_slice %31 {offsets = [0, 0], sizes = [8, 16], strides = [1, 1]} : vector<8x32xbf16> to vector<8x16xbf16>
    %39 = vector.extract_strided_slice %37 {offsets = [0, 0], sizes = [8, 16], strides = [1, 1]} : vector<8x32xbf16> to vector<8x16xbf16>
    %cst_20 = arith.constant dense<0.000000e+00> : vector<8x8xf32>
    %40 = tpu.matmul %38, %39, %cst_20 {dimension_numbers = #tpu.dot_dimension_numbers<[1], [1], [0], [0], [0, 0, 1, 0], [], []>} : vector<8x16xbf16>, vector<8x16xbf16>, vector<8x8xf32> -> vector<8x8xf32>
    %cst_21 = arith.constant 2.500000e-01 : f32
    %41 = vector.broadcast %cst_21 : f32 to vector<8x8xf32>
    %42 = arith.mulf %40, %41 : vector<8x8xf32>
    %cst_22 = arith.constant dense<0xFF800000> : vector<8xf32>
    %43 = vector.multi_reduction <maximumf>, %42, %cst_22 [0] : vector<8x8xf32> to vector<8xf32>
    %44 = vector.shape_cast %43 : vector<8xf32> to vector<1x8xf32>
    %45 = vector.broadcast %44 : vector<1x8xf32> to vector<8x8xf32>
    %46 = arith.subf %42, %45 : vector<8x8xf32>
    %47 = math.exp %46 : vector<8x8xf32>
    %cst_23 = arith.constant dense<0.000000e+00> : vector<8xf32>
    %48 = vector.multi_reduction <add>, %47, %cst_23 [0] : vector<8x8xf32> to vector<8xf32>
    %49 = vector.shape_cast %48 : vector<8xf32> to vector<1x8xf32>
    %50 = tpu.reciprocal %49 {approx = true} : vector<1x8xf32> -> vector<1x8xf32>
    %51 = vector.broadcast %50 : vector<1x8xf32> to vector<8x8xf32>
    %52 = arith.mulf %47, %51 : vector<8x8xf32>
    %53 = arith.truncf %52 : vector<8x8xf32> to vector<8x8xbf16>
    %c0_24 = arith.constant 0 : index
    %c0_25 = arith.constant 0 : index
    %c0_26 = arith.constant 0 : index
    %54 = vector.load %arg8[%c0_24, %c0_25, %c0_26] : memref<2x8x8xbf16, #tpu.memory_space<vmem>>, vector<1x8x8xbf16>
    %55 = vector.shape_cast %54 : vector<1x8x8xbf16> to vector<8x8xbf16>
    %56 = vector.shape_cast %53 : vector<8x8xbf16> to vector<1x8x8xbf16>
    tpu.vector_store %arg8[%c0_24, %c0_25, %c0_26], %56 {strides = array<i32>} : memref<2x8x8xbf16, #tpu.memory_space<vmem>>, vector<1x8x8xbf16>,
    %57 = vector.extract_strided_slice %31 {offsets = [0, 16], sizes = [8, 16], strides = [1, 1]} : vector<8x32xbf16> to vector<8x16xbf16>
    %58 = vector.extract_strided_slice %37 {offsets = [0, 16], sizes = [8, 16], strides = [1, 1]} : vector<8x32xbf16> to vector<8x16xbf16>
    %cst_27 = arith.constant dense<0.000000e+00> : vector<8x8xf32>
    %59 = tpu.matmul %57, %58, %cst_27 {dimension_numbers = #tpu.dot_dimension_numbers<[1], [1], [0], [0], [0, 0, 1, 0], [], []>} : vector<8x16xbf16>, vector<8x16xbf16>, vector<8x8xf32> -> vector<8x8xf32>
    %cst_28 = arith.constant 2.500000e-01 : f32
    %60 = vector.broadcast %cst_28 : f32 to vector<8x8xf32>
    %61 = arith.mulf %59, %60 : vector<8x8xf32>
    %cst_29 = arith.constant dense<0xFF800000> : vector<8xf32>
    %62 = vector.multi_reduction <maximumf>, %61, %cst_29 [0] : vector<8x8xf32> to vector<8xf32>
    %63 = vector.shape_cast %62 : vector<8xf32> to vector<1x8xf32>
    %64 = vector.broadcast %63 : vector<1x8xf32> to vector<8x8xf32>
    %65 = arith.subf %61, %64 : vector<8x8xf32>
    %66 = math.exp %65 : vector<8x8xf32>
    %cst_30 = arith.constant dense<0.000000e+00> : vector<8xf32>
    %67 = vector.multi_reduction <add>, %66, %cst_30 [0] : vector<8x8xf32> to vector<8xf32>
    %68 = vector.shape_cast %67 : vector<8xf32> to vector<1x8xf32>
    %69 = tpu.reciprocal %68 {approx = true} : vector<1x8xf32> -> vector<1x8xf32>
    %70 = vector.broadcast %69 : vector<1x8xf32> to vector<8x8xf32>
    %71 = arith.mulf %66, %70 : vector<8x8xf32>
    %72 = arith.truncf %71 : vector<8x8xf32> to vector<8x8xbf16>
    %c1 = arith.constant 1 : index
    %c0_31 = arith.constant 0 : index
    %c0_32 = arith.constant 0 : index
    %73 = vector.load %arg8[%c1, %c0_31, %c0_32] : memref<2x8x8xbf16, #tpu.memory_space<vmem>>, vector<1x8x8xbf16>
    %74 = vector.shape_cast %73 : vector<1x8x8xbf16> to vector<8x8xbf16>
    %75 = vector.shape_cast %72 : vector<8x8xbf16> to vector<1x8x8xbf16>
    tpu.vector_store %arg8[%c1, %c0_31, %c0_32], %75 {strides = array<i32>} : memref<2x8x8xbf16, #tpu.memory_space<vmem>>, vector<1x8x8xbf16>,
    return
  }
  func.func @transform_0(%arg0: i32) -> (i32, i32) {
    %c0_i32 = arith.constant 0 : i32
    %c0_i32_0 = arith.constant 0 : i32
    %c0_i32_1 = arith.constant 0 : i32
    return %c0_i32, %c0_i32_0 : i32, i32
  }
  func.func @transform_1(%arg0: i32) -> (i32, i32) {
    %c0_i32 = arith.constant 0 : i32
    %c0_i32_0 = arith.constant 0 : i32
    %c0_i32_1 = arith.constant 0 : i32
    return %c0_i32, %c0_i32_0 : i32, i32
  }
  func.func @transform_2(%arg0: i32) -> (i32, i32) {
    %c0_i32 = arith.constant 0 : i32
    %c0_i32_0 = arith.constant 0 : i32
    %c0_i32_1 = arith.constant 0 : i32
    return %c0_i32, %c0_i32_0 : i32, i32
  }
  func.func @transform_3(%arg0: i32) -> (i32, i32) {
    %c0_i32 = arith.constant 0 : i32
    %c0_i32_0 = arith.constant 0 : i32
    %c0_i32_1 = arith.constant 0 : i32
    return %c0_i32, %c0_i32_0 : i32, i32
  }
  func.func @transform_4(%arg0: i32) -> (i32, i32) {
    %c0_i32 = arith.constant 0 : i32
    %c0_i32_0 = arith.constant 0 : i32
    %c0_i32_1 = arith.constant 0 : i32
    return %c0_i32, %c0_i32_0 : i32, i32
  }
  func.func @transform_5(%arg0: i32) -> (i32, i32) {
    %c0_i32 = arith.constant 0 : i32
    %c0_i32_0 = arith.constant 0 : i32
    %c0_i32_1 = arith.constant 0 : i32
    return %c0_i32, %c0_i32_0 : i32, i32
  }
  func.func @transform_6(%arg0: i32) -> (i32, i32) {
    %c0_i32 = arith.constant 0 : i32
    %c0_i32_0 = arith.constant 0 : i32
    %c0_i32_1 = arith.constant 0 : i32
    return %c0_i32, %c0_i32_0 : i32, i32
  }
  func.func @transform_7(%arg0: i32) -> (i32, i32, i32) {
    %c0_i32 = arith.constant 0 : i32
    %c0_i32_0 = arith.constant 0 : i32
    %c0_i32_1 = arith.constant 0 : i32
    %c0_i32_2 = arith.constant 0 : i32
    return %c0_i32, %c0_i32_0, %c0_i32_1 : i32, i32, i32
  }
}

module attributes {stable_mosaic.version = 11 : i64} {
  func.func @_pos_bias_kernel(%arg0: i32, %arg1: memref<8x32xf32, #tpu.memory_space<vmem>>, %arg2: memref<1x32xf32, #tpu.memory_space<vmem>>, %arg3: memref<1x32xf32, #tpu.memory_space<vmem>>, %arg4: memref<32x32xbf16, #tpu.memory_space<vmem>>, %arg5: memref<1x32xf32, #tpu.memory_space<vmem>>, %arg6: memref<32x32xbf16, #tpu.memory_space<vmem>>, %arg7: memref<1x32xf32, #tpu.memory_space<vmem>>, %arg8: memref<2x8x8xbf16, #tpu.memory_space<vmem>>) attributes {dimension_semantics = [#tpu.dimension_semantics<arbitrary>], iteration_bounds = array<i64: 1>, scalar_prefetch = 0 : i64, scratch_operands = 0 : i64, tpu.core_type = #tpu.core_type<tc>, window_params = [{pipeline_mode = #tpu.pipeline_mode<synchronous>, transform_indices = @transform_0, window_bounds = array<i64: 8, 32>}, {pipeline_mode = #tpu.pipeline_mode<synchronous>, transform_indices = @transform_1, window_bounds = array<i64: 1, 32>}, {pipeline_mode = #tpu.pipeline_mode<synchronous>, transform_indices = @transform_2, window_bounds = array<i64: 1, 32>}, {pipeline_mode = #tpu.pipeline_mode<synchronous>, transform_indices = @transform_3, window_bounds = array<i64: 32, 32>}, {pipeline_mode = #tpu.pipeline_mode<synchronous>, transform_indices = @transform_4, window_bounds = array<i64: 1, 32>}, {pipeline_mode = #tpu.pipeline_mode<synchronous>, transform_indices = @transform_5, window_bounds = array<i64: 32, 32>}, {pipeline_mode = #tpu.pipeline_mode<synchronous>, transform_indices = @transform_6, window_bounds = array<i64: 1, 32>}, {pipeline_mode = #tpu.pipeline_mode<synchronous>, transform_indices = @transform_7, window_bounds = array<i64: 2, 8, 8>}]} {
    %c0 = arith.constant 0 : index
    %c0_0 = arith.constant 0 : index
    %0 = vector.load %arg1[%c0, %c0_0] : memref<8x32xf32, #tpu.memory_space<vmem>>, vector<8x32xf32>
    %c0_1 = arith.constant 0 : index
    %c0_2 = arith.constant 0 : index
    %1 = vector.load %arg2[%c0_1, %c0_2] : memref<1x32xf32, #tpu.memory_space<vmem>>, vector<1x32xf32>
    %c0_3 = arith.constant 0 : index
    %c0_4 = arith.constant 0 : index
    %2 = vector.load %arg3[%c0_3, %c0_4] : memref<1x32xf32, #tpu.memory_space<vmem>>, vector<1x32xf32>
    %cst = arith.constant dense<0.000000e+00> : vector<8xf32>
    %3 = vector.multi_reduction <add>, %0, %cst [1] : vector<8x32xf32> to vector<8xf32>
    %4 = vector.shape_cast %3 : vector<8xf32> to vector<8x1xf32>
    %cst_5 = arith.constant 3.200000e+01 : f32
    %5 = vector.broadcast %cst_5 : f32 to vector<8x1xf32>
    %6 = arith.divf %4, %5 : vector<8x1xf32>
    %7 = vector.broadcast %6 : vector<8x1xf32> to vector<8x32xf32>
    %8 = arith.subf %0, %7 : vector<8x32xf32>
    %9 = arith.mulf %8, %8 : vector<8x32xf32>
    %cst_6 = arith.constant dense<0.000000e+00> : vector<8xf32>
    %10 = vector.multi_reduction <add>, %9, %cst_6 [1] : vector<8x32xf32> to vector<8xf32>
    %11 = vector.shape_cast %10 : vector<8xf32> to vector<8x1xf32>
    %cst_7 = arith.constant 3.200000e+01 : f32
    %12 = vector.broadcast %cst_7 : f32 to vector<8x1xf32>
    %13 = arith.divf %11, %12 : vector<8x1xf32>
    %cst_8 = arith.constant 9.99999996E-13 : f32
    %14 = vector.broadcast %cst_8 : f32 to vector<8x1xf32>
    %15 = arith.addf %13, %14 : vector<8x1xf32>
    %16 = math.rsqrt %15 : vector<8x1xf32>
    %17 = vector.broadcast %16 : vector<8x1xf32> to vector<8x32xf32>
    %18 = arith.mulf %8, %17 : vector<8x32xf32>
    %19 = vector.broadcast %1 : vector<1x32xf32> to vector<8x32xf32>
    %20 = arith.mulf %18, %19 : vector<8x32xf32>
    %21 = vector.broadcast %2 : vector<1x32xf32> to vector<8x32xf32>
    %22 = arith.addf %20, %21 : vector<8x32xf32>
    %23 = arith.truncf %22 : vector<8x32xf32> to vector<8x32xbf16>
    %c0_9 = arith.constant 0 : index
    %c0_10 = arith.constant 0 : index
    %24 = vector.load %arg4[%c0_9, %c0_10] : memref<32x32xbf16, #tpu.memory_space<vmem>>, vector<32x32xbf16>
    %cst_11 = arith.constant dense<0.000000e+00> : vector<8x32xf32>
    %25 = tpu.matmul %23, %24, %cst_11 {dimension_numbers = #tpu.dot_dimension_numbers<[1], [0], [0], [1], [0, 0, 1, 1], [], []>} : vector<8x32xbf16>, vector<32x32xbf16>, vector<8x32xf32> -> vector<8x32xf32>
    %c0_12 = arith.constant 0 : index
    %c0_13 = arith.constant 0 : index
    %26 = vector.load %arg5[%c0_12, %c0_13] : memref<1x32xf32, #tpu.memory_space<vmem>>, vector<1x32xf32>
    %27 = vector.broadcast %26 : vector<1x32xf32> to vector<8x32xf32>
    %28 = arith.addf %25, %27 : vector<8x32xf32>
    %cst_14 = arith.constant 0.176776692 : f32
    %29 = vector.broadcast %cst_14 : f32 to vector<8x32xf32>
    %30 = arith.mulf %28, %29 : vector<8x32xf32>
    %31 = arith.truncf %30 : vector<8x32xf32> to vector<8x32xbf16>
    %c0_15 = arith.constant 0 : index
    %c0_16 = arith.constant 0 : index
    %32 = vector.load %arg6[%c0_15, %c0_16] : memref<32x32xbf16, #tpu.memory_space<vmem>>, vector<32x32xbf16>
    %cst_17 = arith.constant dense<0.000000e+00> : vector<8x32xf32>
    %33 = tpu.matmul %23, %32, %cst_17 {dimension_numbers = #tpu.dot_dimension_numbers<[1], [0], [0], [1], [0, 0, 1, 1], [], []>} : vector<8x32xbf16>, vector<32x32xbf16>, vector<8x32xf32> -> vector<8x32xf32>
    %c0_18 = arith.constant 0 : index
    %c0_19 = arith.constant 0 : index
    %34 = vector.load %arg7[%c0_18, %c0_19] : memref<1x32xf32, #tpu.memory_space<vmem>>, vector<1x32xf32>
    %35 = vector.broadcast %34 : vector<1x32xf32> to vector<8x32xf32>
    %36 = arith.addf %33, %35 : vector<8x32xf32>
    %37 = arith.truncf %36 : vector<8x32xf32> to vector<8x32xbf16>
    %38 = vector.extract_strided_slice %31 {offsets = [0, 0], sizes = [8, 16], strides = [1, 1]} : vector<8x32xbf16> to vector<8x16xbf16>
    %39 = vector.extract_strided_slice %37 {offsets = [0, 0], sizes = [8, 16], strides = [1, 1]} : vector<8x32xbf16> to vector<8x16xbf16>
    %cst_20 = arith.constant dense<0.000000e+00> : vector<8x8xf32>
    %40 = tpu.matmul %38, %39, %cst_20 {dimension_numbers = #tpu.dot_dimension_numbers<[1], [1], [0], [0], [0, 0, 1, 0], [], []>} : vector<8x16xbf16>, vector<8x16xbf16>, vector<8x8xf32> -> vector<8x8xf32>
    %cst_21 = arith.constant 2.500000e-01 : f32
    %41 = vector.broadcast %cst_21 : f32 to vector<8x8xf32>
    %42 = arith.mulf %40, %41 : vector<8x8xf32>
    %cst_22 = arith.constant dense<0xFF800000> : vector<8xf32>
    %43 = vector.multi_reduction <maximumf>, %42, %cst_22 [0] : vector<8x8xf32> to vector<8xf32>
    %44 = vector.shape_cast %43 : vector<8xf32> to vector<1x8xf32>
    %45 = vector.broadcast %44 : vector<1x8xf32> to vector<8x8xf32>
    %46 = arith.subf %42, %45 : vector<8x8xf32>
    %47 = math.exp %46 : vector<8x8xf32>
    %cst_23 = arith.constant dense<0.000000e+00> : vector<8xf32>
    %48 = vector.multi_reduction <add>, %47, %cst_23 [0] : vector<8x8xf32> to vector<8xf32>
    %49 = vector.shape_cast %48 : vector<8xf32> to vector<1x8xf32>
    %50 = tpu.reciprocal %49 {approx = true} : vector<1x8xf32> -> vector<1x8xf32>
    %51 = vector.broadcast %50 : vector<1x8xf32> to vector<8x8xf32>
    %52 = arith.mulf %47, %51 : vector<8x8xf32>
    %53 = arith.truncf %52 : vector<8x8xf32> to vector<8x8xbf16>
    %c0_24 = arith.constant 0 : index
    %c0_25 = arith.constant 0 : index
    %c0_26 = arith.constant 0 : index
    %54 = vector.load %arg8[%c0_24, %c0_25, %c0_26] : memref<2x8x8xbf16, #tpu.memory_space<vmem>>, vector<1x8x8xbf16>
    %55 = vector.shape_cast %54 : vector<1x8x8xbf16> to vector<8x8xbf16>
    %56 = vector.shape_cast %53 : vector<8x8xbf16> to vector<1x8x8xbf16>
    tpu.vector_store %arg8[%c0_24, %c0_25, %c0_26], %56 {strides = array<i32>} : memref<2x8x8xbf16, #tpu.memory_space<vmem>>, vector<1x8x8xbf16>,
    %57 = vector.extract_strided_slice %31 {offsets = [0, 16], sizes = [8, 16], strides = [1, 1]} : vector<8x32xbf16> to vector<8x16xbf16>
    %58 = vector.extract_strided_slice %37 {offsets = [0, 16], sizes = [8, 16], strides = [1, 1]} : vector<8x32xbf16> to vector<8x16xbf16>
    %cst_27 = arith.constant dense<0.000000e+00> : vector<8x8xf32>
    %59 = tpu.matmul %57, %58, %cst_27 {dimension_numbers = #tpu.dot_dimension_numbers<[1], [1], [0], [0], [0, 0, 1, 0], [], []>} : vector<8x16xbf16>, vector<8x16xbf16>, vector<8x8xf32> -> vector<8x8xf32>
    %cst_28 = arith.constant 2.500000e-01 : f32
    %60 = vector.broadcast %cst_28 : f32 to vector<8x8xf32>
    %61 = arith.mulf %59, %60 : vector<8x8xf32>
    %cst_29 = arith.constant dense<0xFF800000> : vector<8xf32>
    %62 = vector.multi_reduction <maximumf>, %61, %cst_29 [0] : vector<8x8xf32> to vector<8xf32>
    %63 = vector.shape_cast %62 : vector<8xf32> to vector<1x8xf32>
    %64 = vector.broadcast %63 : vector<1x8xf32> to vector<8x8xf32>
    %65 = arith.subf %61, %64 : vector<8x8xf32>
    %66 = math.exp %65 : vector<8x8xf32>
    %cst_30 = arith.constant dense<0.000000e+00> : vector<8xf32>
    %67 = vector.multi_reduction <add>, %66, %cst_30 [0] : vector<8x8xf32> to vector<8xf32>
    %68 = vector.shape_cast %67 : vector<8xf32> to vector<1x8xf32>
    %69 = tpu.reciprocal %68 {approx = true} : vector<1x8xf32> -> vector<1x8xf32>
    %70 = vector.broadcast %69 : vector<1x8xf32> to vector<8x8xf32>
    %71 = arith.mulf %66, %70 : vector<8x8xf32>
    %72 = arith.truncf %71 : vector<8x8xf32> to vector<8x8xbf16>
    %c1 = arith.constant 1 : index
    %c0_31 = arith.constant 0 : index
    %c0_32 = arith.constant 0 : index
    %73 = vector.load %arg8[%c1, %c0_31, %c0_32] : memref<2x8x8xbf16, #tpu.memory_space<vmem>>, vector<1x8x8xbf16>
    %74 = vector.shape_cast %73 : vector<1x8x8xbf16> to vector<8x8xbf16>
    %75 = vector.shape_cast %72 : vector<8x8xbf16> to vector<1x8x8xbf16>
    tpu.vector_store %arg8[%c1, %c0_31, %c0_32], %75 {strides = array<i32>} : memref<2x8x8xbf16, #tpu.memory_space<vmem>>, vector<1x8x8xbf16>,
    return
  }
  func.func @transform_0(%arg0: i32) -> (i32, i32) {
    %c0_i32 = arith.constant 0 : i32
    %c0_i32_0 = arith.constant 0 : i32
    %c0_i32_1 = arith.constant 0 : i32
    return %c0_i32, %c0_i32_0 : i32, i32
  }
  func.func @transform_1(%arg0: i32) -> (i32, i32) {
    %c0_i32 = arith.constant 0 : i32
    %c0_i32_0 = arith.constant 0 : i32
    %c0_i32_1 = arith.constant 0 : i32
    return %c0_i32, %c0_i32_0 : i32, i32
  }
  func.func @transform_2(%arg0: i32) -> (i32, i32) {
    %c0_i32 = arith.constant 0 : i32
    %c0_i32_0 = arith.constant 0 : i32
    %c0_i32_1 = arith.constant 0 : i32
    return %c0_i32, %c0_i32_0 : i32, i32
  }
  func.func @transform_3(%arg0: i32) -> (i32, i32) {
    %c0_i32 = arith.constant 0 : i32
    %c0_i32_0 = arith.constant 0 : i32
    %c0_i32_1 = arith.constant 0 : i32
    return %c0_i32, %c0_i32_0 : i32, i32
  }
  func.func @transform_4(%arg0: i32) -> (i32, i32) {
    %c0_i32 = arith.constant 0 : i32
    %c0_i32_0 = arith.constant 0 : i32
    %c0_i32_1 = arith.constant 0 : i32
    return %c0_i32, %c0_i32_0 : i32, i32
  }
  func.func @transform_5(%arg0: i32) -> (i32, i32) {
    %c0_i32 = arith.constant 0 : i32
    %c0_i32_0 = arith.constant 0 : i32
    %c0_i32_1 = arith.constant 0 : i32
    return %c0_i32, %c0_i32_0 : i32, i32
  }
  func.func @transform_6(%arg0: i32) -> (i32, i32) {
    %c0_i32 = arith.constant 0 : i32
    %c0_i32_0 = arith.constant 0 : i32
    %c0_i32_1 = arith.constant 0 : i32
    return %c0_i32, %c0_i32_0 : i32, i32
  }
  func.func @transform_7(%arg0: i32) -> (i32, i32, i32) {
    %c0_i32 = arith.constant 0 : i32
    %c0_i32_0 = arith.constant 0 : i32
    %c0_i32_1 = arith.constant 0 : i32
    %c0_i32_2 = arith.constant 0 : i32
    return %c0_i32, %c0_i32_0, %c0_i32_1 : i32, i32, i32
  }
}

</mosaic_0001>

<llo_original>
// kernel: tpu_custom_call.1
$region0: #{tpu_custom_call.1}
  #allocation0 [shape = 'u32[]', space=smem, size = 0x4, offset = 0x4, fixed_abs, tag = 'smem constant byte address 0x4 - core index']
  #allocation1 [shape = 'u32[144,128]{1,0:T(1,128)}', space=vmem, size = 0x12000, scoped, tag = 'internal scratch']
  %s0 = inlined_call_operand.hbm [shape: f32[8,32], index: 0, kind: input, shape index: {}]
  %s1 = inlined_call_operand.vmem [shape: f32[1,32], index: 1, kind: input, shape index: {}]
  %s2 = inlined_call_operand.vmem [shape: f32[1,32], index: 2, kind: input, shape index: {}]
  %s3 = inlined_call_operand.hbm [shape: bf16[32,32], index: 3, kind: input, shape index: {}]
  %s4 = inlined_call_operand.vmem [shape: f32[1,32], index: 4, kind: input, shape index: {}]
  %s5 = inlined_call_operand.hbm [shape: bf16[32,32], index: 5, kind: input, shape index: {}]
  %s6 = inlined_call_operand.vmem [shape: f32[1,32], index: 6, kind: input, shape index: {}]
  %s7 = inlined_call_operand.hbm [shape: bf16[2,8,8], index: 7, kind: output, shape index: {}]
  %s8 = sld [smem:[#allocation0]]
  $region50: #{tpu_custom_call.1} parent=0
    _
  %s10 = ssub.s32 1, %s8
  %s11 = scalar_select 0, %s10, %s8
  $region1: #{tpu_custom_call.1} parent=0
    #allocation2 [shape = 'u8[4096]{0}', space=vmem, size = 0x1000, scoped, tag = 'input window, operand 0, single buffered']
    #allocation3 [shape = 's32[1]{0}', space=sflag, size = 0x4, scoped, tag = 'scoped memory for tpu_custom_call.1']
    #allocation4 [shape = 's32[1]{0}', space=sflag, size = 0x4, scoped, tag = 'scoped memory for tpu_custom_call.1']
    #allocation5 [shape = 'u8[8192]{0}', space=vmem, size = 0x2000, scoped, tag = 'input window, operand 3, single buffered']
    #allocation6 [shape = 's32[1]{0}', space=sflag, size = 0x4, scoped, tag = 'scoped memory for tpu_custom_call.1']
    #allocation7 [shape = 'u8[8192]{0}', space=vmem, size = 0x2000, scoped, tag = 'input window, operand 5, single buffered']
    #allocation8 [shape = 'u8[4096]{0}', space=vmem, size = 0x1000, scoped, tag = 'output window, operand 0, single buffered']
    %12 = vsyncpa [#allocation3], 0
    %13 = vsyncpa [#allocation6], 0
    %14 = vsyncpa [#allocation4], 0
    // Predicated region
    $region2: #{tpu_custom_call.1} parent=1 // pred_check
      _
    $region3: #{tpu_custom_call.1} parent=1 // pred_check_branch
      %16 = sbr.rel (0) target = $region5
    $region4: #{tpu_custom_call.1} parent=1 // pred_region
      %s18 = ssub.s32 128, 128
      %19 = vsyncadd [#allocation3], %s18
      %s21 = sshll.u32 [#allocation2], 4
      %s22 = int_to_ptr.vmem [resolvable:$true] %s21
      %24 = dma.hbm_to_vmem [thread:$0]  %s0, 128, %s22, [#allocation3]
    $region5: #{tpu_custom_call.1} parent=1 // pred_fallthru
      _
    // Predicated region
    $region6: #{tpu_custom_call.1} parent=1 // pred_check
      _
    $region7: #{tpu_custom_call.1} parent=1 // pred_check_branch
      %26 = sbr.rel (0) target = $region9
    $region8: #{tpu_custom_call.1} parent=1 // pred_region
      _
    $region9: #{tpu_custom_call.1} parent=1 // pred_fallthru
      _
    // Predicated region
    $region10: #{tpu_custom_call.1} parent=1 // pred_check
      _
    $region11: #{tpu_custom_call.1} parent=1 // pred_check_branch
      %28 = sbr.rel (0) target = $region13
    $region12: #{tpu_custom_call.1} parent=1 // pred_region
      _
    $region13: #{tpu_custom_call.1} parent=1 // pred_fallthru
      _
    // Predicated region
    $region14: #{tpu_custom_call.1} parent=1 // pred_check
      _
    $region15: #{tpu_custom_call.1} parent=1 // pred_check_branch
      %30 = sbr.rel (0) target = $region17
    $region16: #{tpu_custom_call.1} parent=1 // pred_region
      %s32 = ssub.s32 256, 256
      %33 = vsyncadd [#allocation6], %s32
      %s34 = sshll.u32 [#allocation5], 4
      %s35 = int_to_ptr.vmem [resolvable:$true] %s34
      %40 = dma.hbm_to_vmem [thread:$0]  %s3, 256, %s35, [#allocation6], 64, 64, 4
    $region17: #{tpu_custom_call.1} parent=1 // pred_fallthru
      _
    // Predicated region
    $region18: #{tpu_custom_call.1} parent=1 // pred_check
      _
    $region19: #{tpu_custom_call.1} parent=1 // pred_check_branch
      %42 = sbr.rel (0) target = $region21
    $region20: #{tpu_custom_call.1} parent=1 // pred_region
      _
    $region21: #{tpu_custom_call.1} parent=1 // pred_fallthru
      _
    // Predicated region
    $region22: #{tpu_custom_call.1} parent=1 // pred_check
      _
    $region23: #{tpu_custom_call.1} parent=1 // pred_check_branch
      %44 = sbr.rel (0) target = $region25
    $region24: #{tpu_custom_call.1} parent=1 // pred_region
      %s46 = ssub.s32 256, 256
      %47 = vsyncadd [#allocation6], %s46
      %s48 = sshll.u32 [#allocation7], 4
      %s49 = int_to_ptr.vmem [resolvable:$true] %s48
      %54 = dma.hbm_to_vmem [thread:$0]  %s5, 256, %s49, [#allocation6], 64, 64, 4
    $region25: #{tpu_custom_call.1} parent=1 // pred_fallthru
      _
    // Predicated region
    $region26: #{tpu_custom_call.1} parent=1 // pred_check
      _
    $region27: #{tpu_custom_call.1} parent=1 // pred_check_branch
      %56 = sbr.rel (0) target = $region29
    $region28: #{tpu_custom_call.1} parent=1 // pred_region
      _
    $region29: #{tpu_custom_call.1} parent=1 // pred_fallthru
      _
    // Predicated region
    $region30: #{tpu_custom_call.1} parent=1 // pred_check
      _
    $region31: #{tpu_custom_call.1} parent=1 // pred_check_branch
      %58 = sbr.rel (0) target = $region33
    $region32: #{tpu_custom_call.1} parent=1 // pred_region
      %59 = dma.done [#allocation3], 128
    $region33: #{tpu_custom_call.1} parent=1 // pred_fallthru
      _
    // Predicated region
    $region34: #{tpu_custom_call.1} parent=1 // pred_check
      _
    $region35: #{tpu_custom_call.1} parent=1 // pred_check_branch
      %61 = sbr.rel (0) target = $region37
    $region36: #{tpu_custom_call.1} parent=1 // pred_region
      %62 = dma.done [#allocation6], 256
    $region37: #{tpu_custom_call.1} parent=1 // pred_fallthru
      _
    // Predicated region
    $region38: #{tpu_custom_call.1} parent=1 // pred_check
      _
    $region39: #{tpu_custom_call.1} parent=1 // pred_check_branch
      %64 = sbr.rel (0) target = $region41
    $region40: #{tpu_custom_call.1} parent=1 // pred_region
      %65 = dma.done [#allocation6], 256
    $region41: #{tpu_custom_call.1} parent=1 // pred_fallthru
      _
    %v67 = vld [vmem:[#allocation2] sm:$0xff]
    %v68 = vld [vmem:[%s1] sm:$0x1]
    %v69 = vld [vmem:[%s2] sm:$0x1]
    %vm70 = vcmask 261120
    %v71 = vsel %vm70, %v67, 0.0
    %72 = vadd.xlane.f32.xlu0 %v71
    %v73 = vpop.xlane.xlu0 %72
    %v74 = vrcp.pop 32.0
    %v75 = vmul.f32 %v73, %v74
    %v76 = vsub.f32 %v67, %v75
    %v77 = vmul.f32 %v76, %v76
    %v78 = vsel %vm70, %v77, 0.0
    %79 = vadd.xlane.f32.xlu0 %v78
    %v80 = vpop.xlane.xlu0 %79
    %v81 = vmul.f32 %v80, %v74
    %v82 = vadd.f32 %v81, 1e-12
    %v83 = vrsqrt.pop %v82
    %v84 = vmul.f32 %v76, %v83
    %v86 = vlaneseq
    %v87 = vshrl.u32 %v86, 7
    %v88 = vsub.s32 0, %v87
    %v89 = vrot.slane %v68, %v88
    %v91 = vmul.f32 %v84, %v89
    %v93 = vlaneseq
    %v94 = vshrl.u32 %v93, 7
    %v95 = vsub.s32 0, %v94
    %v96 = vrot.slane %v69, %v95
    %v98 = vadd.f32 %v91, %v96
    %v99 = vpack.c.bf16 %v98, %v98
    %v100 = vld [vmem:[#allocation5] sm:$0xf]
    %v101 = vld [vmem:[#allocation5 + $0x4] sm:$0xf]
    %v102 = vld [vmem:[#allocation5 + $0x8] sm:$0xf]
    %v103 = vld [vmem:[#allocation5 + $0xc] sm:$0xf]
    %v104 = vld [vmem:[%s4] sm:$0x1]
    %v106 = vlaneseq
    %v107 = vshrl.u32 %v106, 7
    %v108 = vsub.s32 0, %v107
    %v109 = vrot.slane %v104, %v108
    %v115 = vunpack.c.l.b16 %v100
    %v116 = vunpack.c.l.b16 %v101
    %v117 = vunpack.c.l.b16 %v102
    %v118 = vunpack.c.l.b16 %v103
    %v119 = vpack.c.b16 %v116, %v115
    %v120 = vpack.c.b16 %v118, %v117
    %v124 = vsel %vm70, %v99, 0
    %126 = vmatprep.subr.bf16.mxu0 0
    %127 = vmatpush1.bf16.msra.mxu0 0
    %128 = vmatprep.subr.bf16.mxu0 0
    %129 = vmatpush1.bf16.msra.mxu0 0
    %130 = vmatprep.subr.bf16.mxu0 0
    %131 = vmatpush1.bf16.msra.mxu0 0
    %132 = vmatprep.subr.bf16.mxu0 0
    %133 = vmatpush1.bf16.msra.mxu0 0
    %134 = vmatprep.subr.bf16.mxu0 0
    %135 = vmatpush1.bf16.msra.mxu0 0
    %136 = vmatprep.subr.bf16.mxu0 0
    %137 = vmatpush1.bf16.msra.mxu0 0
    %138 = vmatprep.subr.bf16.mxu0 0
    %139 = vmatpush1.bf16.msra.mxu0 %v120
    %140 = vmatprep.subr.bf16.mxu0 0
    %141 = vmatpush1.bf16.msra.mxu0 %v119
    %142 = vmatprep.subr.bf16.mxu0 0
    %143 = vmatpush2.bf16.msra.mxu0 0
    %144 = vmatprep.subr.bf16.mxu0 0
    %145 = vmatpush2.bf16.msra.mxu0 0
    %146 = vmatprep.subr.bf16.mxu0 0
    %147 = vmatpush2.bf16.msra.mxu0 0
    %148 = vmatprep.subr.bf16.mxu0 0
    %149 = vmatpush2.bf16.msra.mxu0 0
    %150 = vmatprep.subr.bf16.mxu0 0
    %151 = vmatpush2.bf16.msra.mxu0 0
    %152 = vmatprep.subr.bf16.mxu0 0
    %153 = vmatpush2.bf16.msra.mxu0 0
    %154 = vmatprep.subr.bf16.mxu0 0
    %155 = vmatpush2.bf16.msra.mxu0 0
    %156 = vmatprep.subr.bf16.mxu0 0
    %157 = vmatpush2.bf16.msra.mxu0 0
    %158 = vmatprep.mubr.bf16.mxu0 0
    %159 = vmatmul.mubr.bf16.gmra.mxu0 %v124
    %v160 = vpop.f32.mrf.mxu0
    %v161 = vadd.f32 %v109, %v160
    %v162 = vpop.f32.mrf.mxu0
    %v163 = vpop.f32.mrf.mxu0
    %v164 = vpop.f32.mrf.mxu0
    %165 = vdwg.mxu0
    %v166 = vmul.f32 %v161, 0.17677669
    %v167 = vpack.c.bf16 %v166, %v166
    %v168 = vld [vmem:[#allocation7] sm:$0xf]
    %v169 = vld [vmem:[#allocation7 + $0x4] sm:$0xf]
    %v170 = vld [vmem:[#allocation7 + $0x8] sm:$0xf]
    %v171 = vld [vmem:[#allocation7 + $0xc] sm:$0xf]
    %v172 = vld [vmem:[%s6] sm:$0x1]
    %v174 = vlaneseq
    %v175 = vshrl.u32 %v174, 7
    %v176 = vsub.s32 0, %v175
    %v177 = vrot.slane %v172, %v176
    %v183 = vunpack.c.l.b16 %v168
    %v184 = vunpack.c.l.b16 %v169
    %v185 = vunpack.c.l.b16 %v170
    %v186 = vunpack.c.l.b16 %v171
    %v187 = vpack.c.b16 %v184, %v183
    %v188 = vpack.c.b16 %v186, %v185
    %191 = vmatprep.subr.bf16.mxu0 0
    %192 = vmatpush1.bf16.msra.mxu0 0
    %193 = vmatprep.subr.bf16.mxu0 0
    %194 = vmatpush1.bf16.msra.mxu0 0
    %195 = vmatprep.subr.bf16.mxu0 0
    %196 = vmatpush1.bf16.msra.mxu0 0
    %197 = vmatprep.subr.bf16.mxu0 0
    %198 = vmatpush1.bf16.msra.mxu0 0
    %199 = vmatprep.subr.bf16.mxu0 0
    %200 = vmatpush1.bf16.msra.mxu0 0
    %201 = vmatprep.subr.bf16.mxu0 0
    %202 = vmatpush1.bf16.msra.mxu0 0
    %203 = vmatprep.subr.bf16.mxu0 0
    %204 = vmatpush1.bf16.msra.mxu0 %v188
    %205 = vmatprep.subr.bf16.mxu0 0
    %206 = vmatpush1.bf16.msra.mxu0 %v187
    %207 = vmatprep.subr.bf16.mxu0 0
    %208 = vmatpush2.bf16.msra.mxu0 0
    %209 = vmatprep.subr.bf16.mxu0 0
    %210 = vmatpush2.bf16.msra.mxu0 0
    %211 = vmatprep.subr.bf16.mxu0 0
    %212 = vmatpush2.bf16.msra.mxu0 0
    %213 = vmatprep.subr.bf16.mxu0 0
    %214 = vmatpush2.bf16.msra.mxu0 0
    %215 = vmatprep.subr.bf16.mxu0 0
    %216 = vmatpush2.bf16.msra.mxu0 0
    %217 = vmatprep.subr.bf16.mxu0 0
    %218 = vmatpush2.bf16.msra.mxu0 0
    %219 = vmatprep.subr.bf16.mxu0 0
    %220 = vmatpush2.bf16.msra.mxu0 0
    %221 = vmatprep.subr.bf16.mxu0 0
    %222 = vmatpush2.bf16.msra.mxu0 0
    %223 = vmatprep.mubr.bf16.mxu0 0
    %224 = vmatmul.mubr.bf16.gmra.mxu0 %v124
    %v225 = vpop.f32.mrf.mxu0
    %v226 = vadd.f32 %v177, %v225
    %v227 = vpop.f32.mrf.mxu0
    %v228 = vpop.f32.mrf.mxu0
    %v229 = vpop.f32.mrf.mxu0
    %230 = vdwg.mxu0
    %v231 = vpack.c.bf16 %v226, %v226
    %vm232 = vcmask 130048
    %v234 = vsel %vm232, %v167, 0
    %v237 = vsel %vm232, %v231, 0
    %239 = vmatprep.subr.bf16.mxu0 0
    %240 = vmatpush1.bf16.xpose.msra.mxu0 0
    %241 = vmatprep.subr.bf16.mxu0 0
    %242 = vmatpush1.bf16.xpose.msra.mxu0 0
    %243 = vmatprep.subr.bf16.mxu0 0
    %244 = vmatpush1.bf16.xpose.msra.mxu0 0
    %245 = vmatprep.subr.bf16.mxu0 0
    %246 = vmatpush1.bf16.xpose.msra.mxu0 0
    %247 = vmatprep.subr.bf16.mxu0 0
    %248 = vmatpush1.bf16.xpose.msra.mxu0 0
    %249 = vmatprep.subr.bf16.mxu0 0
    %250 = vmatpush1.bf16.xpose.msra.mxu0 0
    %251 = vmatprep.subr.bf16.mxu0 0
    %252 = vmatpush1.bf16.xpose.msra.mxu0 0
    %253 = vmatprep.subr.bf16.mxu0 0
    %254 = vmatpush1.bf16.xpose.msra.mxu0 %v237
    %255 = vmatprep.subr.bf16.mxu0 0
    %256 = vmatpush2.bf16.xpose.msra.mxu0 0
    %257 = vmatprep.subr.bf16.mxu0 0
    %258 = vmatpush2.bf16.xpose.msra.mxu0 0
    %259 = vmatprep.subr.bf16.mxu0 0
    %260 = vmatpush2.bf16.xpose.msra.mxu0 0
    %261 = vmatprep.subr.bf16.mxu0 0
    %262 = vmatpush2.bf16.xpose.msra.mxu0 0
    %263 = vmatprep.subr.bf16.mxu0 0
    %264 = vmatpush2.bf16.xpose.msra.mxu0 0
    %265 = vmatprep.subr.bf16.mxu0 0
    %266 = vmatpush2.bf16.xpose.msra.mxu0 0
    %267 = vmatprep.subr.bf16.mxu0 0
    %268 = vmatpush2.bf16.xpose.msra.mxu0 0
    %269 = vmatprep.subr.bf16.mxu0 0
    %270 = vmatpush2.bf16.xpose.msra.mxu0 0
    %271 = vmatprep.mubr.bf16.mxu0 0
    %272 = vmatmul.mubr.bf16.gmra.mxu0 %v234
    %v273 = vpop.f32.mrf.mxu0
    %v274 = vadd.f32 0.0, %v273
    %v275 = vpop.f32.mrf.mxu0
    %v276 = vpop.f32.mrf.mxu0
    %v277 = vpop.f32.mrf.mxu0
    %278 = vdwg.mxu0
    %v279 = vmul.f32 %v274, 0.25
    %vm280 = vcmask 64512
    %v281 = vsel %vm280, %v279, -inf
    %v282 = vrot.slane %v281, 4
    %v283 = vmax.f32 %v281, %v282
    %v284 = vrot.slane %v283, 2
    %v285 = vmax.f32 %v283, %v284
    %v286 = vrot.slane %v285, 1
    %v287 = vmax.f32 %v285, %v286
    %v288 = vsub.f32 %v279, %v287
    %v289 = vmul.f32 %v288, 1.442695
    %v290 = vpow.pop %v289
    %v291 = vsel %vm280, %v290, 0.0
    %v292 = vrot.slane %v291, 4
    %v293 = vadd.f32 %v291, %v292
    %v294 = vrot.slane %v293, 2
    %v295 = vadd.f32 %v293, %v294
    %v296 = vrot.slane %v295, 1
    %v297 = vadd.f32 %v295, %v296
    %v298 = vrcp.pop %v297
    %v299 = vmul.f32 %v290, %v298
    %v300 = vpack.c.bf16 %v299, %v299
    %vm301 = vcmask 60416
    %302 = vst.msk [vmem:[#allocation8] sm:$0xf] %vm301, %v300
    %304 = vrot.lane.b32.xlu0 %v167, 112
    %v305 = vpop.permute.xlu0 %304
    %307 = vrot.lane.b32.xlu0 %v231, 112
    %v308 = vpop.permute.xlu0 %307
    %v310 = vsel %vm232, %v305, 0
    %v313 = vsel %vm232, %v308, 0
    %315 = vmatprep.subr.bf16.mxu0 0
    %316 = vmatpush1.bf16.xpose.msra.mxu0 0
    %317 = vmatprep.subr.bf16.mxu0 0
    %318 = vmatpush1.bf16.xpose.msra.mxu0 0
    %319 = vmatprep.subr.bf16.mxu0 0
    %320 = vmatpush1.bf16.xpose.msra.mxu0 0
    %321 = vmatprep.subr.bf16.mxu0 0
    %322 = vmatpush1.bf16.xpose.msra.mxu0 0
    %323 = vmatprep.subr.bf16.mxu0 0
    %324 = vmatpush1.bf16.xpose.msra.mxu0 0
    %325 = vmatprep.subr.bf16.mxu0 0
    %326 = vmatpush1.bf16.xpose.msra.mxu0 0
    %327 = vmatprep.subr.bf16.mxu0 0
    %328 = vmatpush1.bf16.xpose.msra.mxu0 0
    %329 = vmatprep.subr.bf16.mxu0 0
    %330 = vmatpush1.bf16.xpose.msra.mxu0 %v313
    %331 = vmatprep.subr.bf16.mxu0 0
    %332 = vmatpush2.bf16.xpose.msra.mxu0 0
    %333 = vmatprep.subr.bf16.mxu0 0
    %334 = vmatpush2.bf16.xpose.msra.mxu0 0
    %335 = vmatprep.subr.bf16.mxu0 0
    %336 = vmatpush2.bf16.xpose.msra.mxu0 0
    %337 = vmatprep.subr.bf16.mxu0 0
    %338 = vmatpush2.bf16.xpose.msra.mxu0 0
    %339 = vmatprep.subr.bf16.mxu0 0
    %340 = vmatpush2.bf16.xpose.msra.mxu0 0
    %341 = vmatprep.subr.bf16.mxu0 0
    %342 = vmatpush2.bf16.xpose.msra.mxu0 0
    %343 = vmatprep.subr.bf16.mxu0 0
    %344 = vmatpush2.bf16.xpose.msra.mxu0 0
    %345 = vmatprep.subr.bf16.mxu0 0
    %346 = vmatpush2.bf16.xpose.msra.mxu0 0
    %347 = vmatprep.mubr.bf16.mxu0 0
    %348 = vmatmul.mubr.bf16.gmra.mxu0 %v310
    %v349 = vpop.f32.mrf.mxu0
    %v350 = vadd.f32 0.0, %v349
    %v351 = vpop.f32.mrf.mxu0
    %v352 = vpop.f32.mrf.mxu0
    %v353 = vpop.f32.mrf.mxu0
    %354 = vdwg.mxu0
    %v355 = vmul.f32 %v350, 0.25
    %v356 = vsel %vm280, %v355, -inf
    %v357 = vrot.slane %v356, 4
    %v358 = vmax.f32 %v356, %v357
    %v359 = vrot.slane %v358, 2
    %v360 = vmax.f32 %v358, %v359
    %v361 = vrot.slane %v360, 1
    %v362 = vmax.f32 %v360, %v361
    %v363 = vsub.f32 %v355, %v362
    %v364 = vmul.f32 %v363, 1.442695
    %v365 = vpow.pop %v364
    %v366 = vsel %vm280, %v365, 0.0
    %v367 = vrot.slane %v366, 4
    %v368 = vadd.f32 %v366, %v367
    %v369 = vrot.slane %v368, 2
    %v370 = vadd.f32 %v368, %v369
    %v371 = vrot.slane %v370, 1
    %v372 = vadd.f32 %v370, %v371
    %v373 = vrcp.pop %v372
    %v374 = vmul.f32 %v365, %v373
    %v375 = vpack.c.bf16 %v374, %v374
    %s376 = scalar_lea.vmem [#allocation8], 4
    %377 = vst.msk [vmem:[%s376] sm:$0xf] %vm301, %v375
    // Predicated region
    $region42: #{tpu_custom_call.1} parent=1 // pred_check
      _
    $region43: #{tpu_custom_call.1} parent=1 // pred_check_branch
      %379 = sbr.rel (0) target = $region45
    $region44: #{tpu_custom_call.1} parent=1 // pred_region
      %s381 = ssub.s32 128, 128
      %382 = vsyncadd [#allocation4], %s381
      %s383 = sshll.u32 [#allocation8], 4
      %s384 = int_to_ptr.vmem [resolvable:$true] %s383
      %389 = dma.vmem_to_hbm [thread:$0]  %s384, 128, %s7, [#allocation4], 64, 64, 4
    $region45: #{tpu_custom_call.1} parent=1 // pred_fallthru
      _
    // Predicated region
    $region46: #{tpu_custom_call.1} parent=1 // pred_check
      _
    $region47: #{tpu_custom_call.1} parent=1 // pred_check_branch
      %391 = sbr.rel (0) target = $region49
    $region48: #{tpu_custom_call.1} parent=1 // pred_region
      %392 = dma.done [#allocation4], 128
    $region49: #{tpu_custom_call.1} parent=1 // pred_fallthru
      _
    %393 = vsyncpa [#allocation3], 1
    %394 = vsyncpa [#allocation6], 1
    %395 = vsyncpa [#allocation4], 1

// kernel: tpu_custom_call.1
$region0: #{tpu_custom_call.1}
  #allocation0 [shape = 'u32[]', space=smem, size = 0x4, offset = 0x4, fixed_abs, tag = 'smem constant byte address 0x4 - core index']
  #allocation1 [shape = 'u32[144,128]{1,0:T(1,128)}', space=vmem, size = 0x12000, scoped, tag = 'internal scratch']
  %s0 = inlined_call_operand.hbm [shape: f32[8,32], index: 0, kind: input, shape index: {}]
  %s1 = inlined_call_operand.vmem [shape: f32[1,32], index: 1, kind: input, shape index: {}]
  %s2 = inlined_call_operand.vmem [shape: f32[1,32], index: 2, kind: input, shape index: {}]
  %s3 = inlined_call_operand.hbm [shape: bf16[32,32], index: 3, kind: input, shape index: {}]
  %s4 = inlined_call_operand.vmem [shape: f32[1,32], index: 4, kind: input, shape index: {}]
  %s5 = inlined_call_operand.hbm [shape: bf16[32,32], index: 5, kind: input, shape index: {}]
  %s6 = inlined_call_operand.vmem [shape: f32[1,32], index: 6, kind: input, shape index: {}]
  %s7 = inlined_call_operand.hbm [shape: bf16[2,8,8], index: 7, kind: output, shape index: {}]
  %s8 = sld [smem:[#allocation0]]
  $region50: #{tpu_custom_call.1} parent=0
    _
  %s10 = ssub.s32 1, %s8
  %s11 = scalar_select 0, %s10, %s8
  $region1: #{tpu_custom_call.1} parent=0
    #allocation2 [shape = 'u8[4096]{0}', space=vmem, size = 0x1000, scoped, tag = 'input window, operand 0, single buffered']
    #allocation3 [shape = 's32[1]{0}', space=sflag, size = 0x4, scoped, tag = 'scoped memory for tpu_custom_call.1']
    #allocation4 [shape = 's32[1]{0}', space=sflag, size = 0x4, scoped, tag = 'scoped memory for tpu_custom_call.1']
    #allocation5 [shape = 'u8[8192]{0}', space=vmem, size = 0x2000, scoped, tag = 'input window, operand 3, single buffered']
    #allocation6 [shape = 's32[1]{0}', space=sflag, size = 0x4, scoped, tag = 'scoped memory for tpu_custom_call.1']
    #allocation7 [shape = 'u8[8192]{0}', space=vmem, size = 0x2000, scoped, tag = 'input window, operand 5, single buffered']
    #allocation8 [shape = 'u8[4096]{0}', space=vmem, size = 0x1000, scoped, tag = 'output window, operand 0, single buffered']
    %12 = vsyncpa [#allocation3], 0
    %13 = vsyncpa [#allocation6], 0
    %14 = vsyncpa [#allocation4], 0
    // Predicated region
    $region2: #{tpu_custom_call.1} parent=1 // pred_check
      _
    $region3: #{tpu_custom_call.1} parent=1 // pred_check_branch
      %16 = sbr.rel (0) target = $region5
    $region4: #{tpu_custom_call.1} parent=1 // pred_region
      %s18 = ssub.s32 128, 128
      %19 = vsyncadd [#allocation3], %s18
      %s21 = sshll.u32 [#allocation2], 4
      %s22 = int_to_ptr.vmem [resolvable:$true] %s21
      %24 = dma.hbm_to_vmem [thread:$0]  %s0, 128, %s22, [#allocation3]
    $region5: #{tpu_custom_call.1} parent=1 // pred_fallthru
      _
    // Predicated region
    $region6: #{tpu_custom_call.1} parent=1 // pred_check
      _
    $region7: #{tpu_custom_call.1} parent=1 // pred_check_branch
      %26 = sbr.rel (0) target = $region9
    $region8: #{tpu_custom_call.1} parent=1 // pred_region
      _
    $region9: #{tpu_custom_call.1} parent=1 // pred_fallthru
      _
    // Predicated region
    $region10: #{tpu_custom_call.1} parent=1 // pred_check
      _
    $region11: #{tpu_custom_call.1} parent=1 // pred_check_branch
      %28 = sbr.rel (0) target = $region13
    $region12: #{tpu_custom_call.1} parent=1 // pred_region
      _
    $region13: #{tpu_custom_call.1} parent=1 // pred_fallthru
      _
    // Predicated region
    $region14: #{tpu_custom_call.1} parent=1 // pred_check
      _
    $region15: #{tpu_custom_call.1} parent=1 // pred_check_branch
      %30 = sbr.rel (0) target = $region17
    $region16: #{tpu_custom_call.1} parent=1 // pred_region
      %s32 = ssub.s32 256, 256
      %33 = vsyncadd [#allocation6], %s32
      %s34 = sshll.u32 [#allocation5], 4
      %s35 = int_to_ptr.vmem [resolvable:$true] %s34
      %40 = dma.hbm_to_vmem [thread:$0]  %s3, 256, %s35, [#allocation6], 64, 64, 4
    $region17: #{tpu_custom_call.1} parent=1 // pred_fallthru
      _
    // Predicated region
    $region18: #{tpu_custom_call.1} parent=1 // pred_check
      _
    $region19: #{tpu_custom_call.1} parent=1 // pred_check_branch
      %42 = sbr.rel (0) target = $region21
    $region20: #{tpu_custom_call.1} parent=1 // pred_region
      _
    $region21: #{tpu_custom_call.1} parent=1 // pred_fallthru
      _
    // Predicated region
    $region22: #{tpu_custom_call.1} parent=1 // pred_check
      _
    $region23: #{tpu_custom_call.1} parent=1 // pred_check_branch
      %44 = sbr.rel (0) target = $region25
    $region24: #{tpu_custom_call.1} parent=1 // pred_region
      %s46 = ssub.s32 256, 256
      %47 = vsyncadd [#allocation6], %s46
      %s48 = sshll.u32 [#allocation7], 4
      %s49 = int_to_ptr.vmem [resolvable:$true] %s48
      %54 = dma.hbm_to_vmem [thread:$0]  %s5, 256, %s49, [#allocation6], 64, 64, 4
    $region25: #{tpu_custom_call.1} parent=1 // pred_fallthru
      _
    // Predicated region
    $region26: #{tpu_custom_call.1} parent=1 // pred_check
      _
    $region27: #{tpu_custom_call.1} parent=1 // pred_check_branch
      %56 = sbr.rel (0) target = $region29
    $region28: #{tpu_custom_call.1} parent=1 // pred_region
      _
    $region29: #{tpu_custom_call.1} parent=1 // pred_fallthru
      _
    // Predicated region
    $region30: #{tpu_custom_call.1} parent=1 // pred_check
      _
    $region31: #{tpu_custom_call.1} parent=1 // pred_check_branch
      %58 = sbr.rel (0) target = $region33
    $region32: #{tpu_custom_call.1} parent=1 // pred_region
      %59 = dma.done [#allocation3], 128
    $region33: #{tpu_custom_call.1} parent=1 // pred_fallthru
      _
    // Predicated region
    $region34: #{tpu_custom_call.1} parent=1 // pred_check
      _
    $region35: #{tpu_custom_call.1} parent=1 // pred_check_branch
      %61 = sbr.rel (0) target = $region37
    $region36: #{tpu_custom_call.1} parent=1 // pred_region
      %62 = dma.done [#allocation6], 256
    $region37: #{tpu_custom_call.1} parent=1 // pred_fallthru
      _
    // Predicated region
    $region38: #{tpu_custom_call.1} parent=1 // pred_check
      _
    $region39: #{tpu_custom_call.1} parent=1 // pred_check_branch
      %64 = sbr.rel (0) target = $region41
    $region40: #{tpu_custom_call.1} parent=1 // pred_region
      %65 = dma.done [#allocation6], 256
    $region41: #{tpu_custom_call.1} parent=1 // pred_fallthru
      _
    %v67 = vld [vmem:[#allocation2] sm:$0xff]
    %v68 = vld [vmem:[%s1] sm:$0x1]
    %v69 = vld [vmem:[%s2] sm:$0x1]
    %vm70 = vcmask 261120
    %v71 = vsel %vm70, %v67, 0.0
    %72 = vadd.xlane.f32.xlu0 %v71
    %v73 = vpop.xlane.xlu0 %72
    %v74 = vrcp.pop 32.0
    %v75 = vmul.f32 %v73, %v74
    %v76 = vsub.f32 %v67, %v75
    %v77 = vmul.f32 %v76, %v76
    %v78 = vsel %vm70, %v77, 0.0
    %79 = vadd.xlane.f32.xlu0 %v78
    %v80 = vpop.xlane.xlu0 %79
    %v81 = vmul.f32 %v80, %v74
    %v82 = vadd.f32 %v81, 1e-12
    %v83 = vrsqrt.pop %v82
    %v84 = vmul.f32 %v76, %v83
    %v86 = vlaneseq
    %v87 = vshrl.u32 %v86, 7
    %v88 = vsub.s32 0, %v87
    %v89 = vrot.slane %v68, %v88
    %v91 = vmul.f32 %v84, %v89
    %v93 = vlaneseq
    %v94 = vshrl.u32 %v93, 7
    %v95 = vsub.s32 0, %v94
    %v96 = vrot.slane %v69, %v95
    %v98 = vadd.f32 %v91, %v96
    %v99 = vpack.c.bf16 %v98, %v98
    %v100 = vld [vmem:[#allocation5] sm:$0xf]
    %v101 = vld [vmem:[#allocation5 + $0x4] sm:$0xf]
    %v102 = vld [vmem:[#allocation5 + $0x8] sm:$0xf]
    %v103 = vld [vmem:[#allocation5 + $0xc] sm:$0xf]
    %v104 = vld [vmem:[%s4] sm:$0x1]
    %v106 = vlaneseq
    %v107 = vshrl.u32 %v106, 7
    %v108 = vsub.s32 0, %v107
    %v109 = vrot.slane %v104, %v108
    %v115 = vunpack.c.l.b16 %v100
    %v116 = vunpack.c.l.b16 %v101
    %v117 = vunpack.c.l.b16 %v102
    %v118 = vunpack.c.l.b16 %v103
    %v119 = vpack.c.b16 %v116, %v115
    %v120 = vpack.c.b16 %v118, %v117
    %v124 = vsel %vm70, %v99, 0
    %126 = vmatprep.subr.bf16.mxu0 0
    %127 = vmatpush1.bf16.msra.mxu0 0
    %128 = vmatprep.subr.bf16.mxu0 0
    %129 = vmatpush1.bf16.msra.mxu0 0
    %130 = vmatprep.subr.bf16.mxu0 0
    %131 = vmatpush1.bf16.msra.mxu0 0
    %132 = vmatprep.subr.bf16.mxu0 0
    %133 = vmatpush1.bf16.msra.mxu0 0
    %134 = vmatprep.subr.bf16.mxu0 0
    %135 = vmatpush1.bf16.msra.mxu0 0
    %136 = vmatprep.subr.bf16.mxu0 0
    %137 = vmatpush1.bf16.msra.mxu0 0
    %138 = vmatprep.subr.bf16.mxu0 0
    %139 = vmatpush1.bf16.msra.mxu0 %v120
    %140 = vmatprep.subr.bf16.mxu0 0
    %141 = vmatpush1.bf16.msra.mxu0 %v119
    %142 = vmatprep.subr.bf16.mxu0 0
    %143 = vmatpush2.bf16.msra.mxu0 0
    %144 = vmatprep.subr.bf16.mxu0 0
    %145 = vmatpush2.bf16.msra.mxu0 0
    %146 = vmatprep.subr.bf16.mxu0 0
    %147 = vmatpush2.bf16.msra.mxu0 0
    %148 = vmatprep.subr.bf16.mxu0 0
    %149 = vmatpush2.bf16.msra.mxu0 0
    %150 = vmatprep.subr.bf16.mxu0 0
    %151 = vmatpush2.bf16.msra.mxu0 0
    %152 = vmatprep.subr.bf16.mxu0 0
    %153 = vmatpush2.bf16.msra.mxu0 0
    %154 = vmatprep.subr.bf16.mxu0 0
    %155 = vmatpush2.bf16.msra.mxu0 0
    %156 = vmatprep.subr.bf16.mxu0 0
    %157 = vmatpush2.bf16.msra.mxu0 0
    %158 = vmatprep.mubr.bf16.mxu0 0
    %159 = vmatmul.mubr.bf16.gmra.mxu0 %v124
    %v160 = vpop.f32.mrf.mxu0
    %v161 = vadd.f32 %v109, %v160
    %v162 = vpop.f32.mrf.mxu0
    %v163 = vpop.f32.mrf.mxu0
    %v164 = vpop.f32.mrf.mxu0
    %165 = vdwg.mxu0
    %v166 = vmul.f32 %v161, 0.17677669
    %v167 = vpack.c.bf16 %v166, %v166
    %v168 = vld [vmem:[#allocation7] sm:$0xf]
    %v169 = vld [vmem:[#allocation7 + $0x4] sm:$0xf]
    %v170 = vld [vmem:[#allocation7 + $0x8] sm:$0xf]
    %v171 = vld [vmem:[#allocation7 + $0xc] sm:$0xf]
    %v172 = vld [vmem:[%s6] sm:$0x1]
    %v174 = vlaneseq
    %v175 = vshrl.u32 %v174, 7
    %v176 = vsub.s32 0, %v175
    %v177 = vrot.slane %v172, %v176
    %v183 = vunpack.c.l.b16 %v168
    %v184 = vunpack.c.l.b16 %v169
    %v185 = vunpack.c.l.b16 %v170
    %v186 = vunpack.c.l.b16 %v171
    %v187 = vpack.c.b16 %v184, %v183
    %v188 = vpack.c.b16 %v186, %v185
    %191 = vmatprep.subr.bf16.mxu0 0
    %192 = vmatpush1.bf16.msra.mxu0 0
    %193 = vmatprep.subr.bf16.mxu0 0
    %194 = vmatpush1.bf16.msra.mxu0 0
    %195 = vmatprep.subr.bf16.mxu0 0
    %196 = vmatpush1.bf16.msra.mxu0 0
    %197 = vmatprep.subr.bf16.mxu0 0
    %198 = vmatpush1.bf16.msra.mxu0 0
    %199 = vmatprep.subr.bf16.mxu0 0
    %200 = vmatpush1.bf16.msra.mxu0 0
    %201 = vmatprep.subr.bf16.mxu0 0
    %202 = vmatpush1.bf16.msra.mxu0 0
    %203 = vmatprep.subr.bf16.mxu0 0
    %204 = vmatpush1.bf16.msra.mxu0 %v188
    %205 = vmatprep.subr.bf16.mxu0 0
    %206 = vmatpush1.bf16.msra.mxu0 %v187
    %207 = vmatprep.subr.bf16.mxu0 0
    %208 = vmatpush2.bf16.msra.mxu0 0
    %209 = vmatprep.subr.bf16.mxu0 0
    %210 = vmatpush2.bf16.msra.mxu0 0
    %211 = vmatprep.subr.bf16.mxu0 0
    %212 = vmatpush2.bf16.msra.mxu0 0
    %213 = vmatprep.subr.bf16.mxu0 0
    %214 = vmatpush2.bf16.msra.mxu0 0
    %215 = vmatprep.subr.bf16.mxu0 0
    %216 = vmatpush2.bf16.msra.mxu0 0
    %217 = vmatprep.subr.bf16.mxu0 0
    %218 = vmatpush2.bf16.msra.mxu0 0
    %219 = vmatprep.subr.bf16.mxu0 0
    %220 = vmatpush2.bf16.msra.mxu0 0
    %221 = vmatprep.subr.bf16.mxu0 0
    %222 = vmatpush2.bf16.msra.mxu0 0
    %223 = vmatprep.mubr.bf16.mxu0 0
    %224 = vmatmul.mubr.bf16.gmra.mxu0 %v124
    %v225 = vpop.f32.mrf.mxu0
    %v226 = vadd.f32 %v177, %v225
    %v227 = vpop.f32.mrf.mxu0
    %v228 = vpop.f32.mrf.mxu0
    %v229 = vpop.f32.mrf.mxu0
    %230 = vdwg.mxu0
    %v231 = vpack.c.bf16 %v226, %v226
    %vm232 = vcmask 130048
    %v234 = vsel %vm232, %v167, 0
    %v237 = vsel %vm232, %v231, 0
    %239 = vmatprep.subr.bf16.mxu0 0
    %240 = vmatpush1.bf16.xpose.msra.mxu0 0
    %241 = vmatprep.subr.bf16.mxu0 0
    %242 = vmatpush1.bf16.xpose.msra.mxu0 0
    %243 = vmatprep.subr.bf16.mxu0 0
    %244 = vmatpush1.bf16.xpose.msra.mxu0 0
    %245 = vmatprep.subr.bf16.mxu0 0
    %246 = vmatpush1.bf16.xpose.msra.mxu0 0
    %247 = vmatprep.subr.bf16.mxu0 0
    %248 = vmatpush1.bf16.xpose.msra.mxu0 0
    %249 = vmatprep.subr.bf16.mxu0 0
    %250 = vmatpush1.bf16.xpose.msra.mxu0 0
    %251 = vmatprep.subr.bf16.mxu0 0
    %252 = vmatpush1.bf16.xpose.msra.mxu0 0
    %253 = vmatprep.subr.bf16.mxu0 0
    %254 = vmatpush1.bf16.xpose.msra.mxu0 %v237
    %255 = vmatprep.subr.bf16.mxu0 0
    %256 = vmatpush2.bf16.xpose.msra.mxu0 0
    %257 = vmatprep.subr.bf16.mxu0 0
    %258 = vmatpush2.bf16.xpose.msra.mxu0 0
    %259 = vmatprep.subr.bf16.mxu0 0
    %260 = vmatpush2.bf16.xpose.msra.mxu0 0
    %261 = vmatprep.subr.bf16.mxu0 0
    %262 = vmatpush2.bf16.xpose.msra.mxu0 0
    %263 = vmatprep.subr.bf16.mxu0 0
    %264 = vmatpush2.bf16.xpose.msra.mxu0 0
    %265 = vmatprep.subr.bf16.mxu0 0
    %266 = vmatpush2.bf16.xpose.msra.mxu0 0
    %267 = vmatprep.subr.bf16.mxu0 0
    %268 = vmatpush2.bf16.xpose.msra.mxu0 0
    %269 = vmatprep.subr.bf16.mxu0 0
    %270 = vmatpush2.bf16.xpose.msra.mxu0 0
    %271 = vmatprep.mubr.bf16.mxu0 0
    %272 = vmatmul.mubr.bf16.gmra.mxu0 %v234
    %v273 = vpop.f32.mrf.mxu0
    %v274 = vadd.f32 0.0, %v273
    %v275 = vpop.f32.mrf.mxu0
    %v276 = vpop.f32.mrf.mxu0
    %v277 = vpop.f32.mrf.mxu0
    %278 = vdwg.mxu0
    %v279 = vmul.f32 %v274, 0.25
    %vm280 = vcmask 64512
    %v281 = vsel %vm280, %v279, -inf
    %v282 = vrot.slane %v281, 4
    %v283 = vmax.f32 %v281, %v282
    %v284 = vrot.slane %v283, 2
    %v285 = vmax.f32 %v283, %v284
    %v286 = vrot.slane %v285, 1
    %v287 = vmax.f32 %v285, %v286
    %v288 = vsub.f32 %v279, %v287
    %v289 = vmul.f32 %v288, 1.442695
    %v290 = vpow.pop %v289
    %v291 = vsel %vm280, %v290, 0.0
    %v292 = vrot.slane %v291, 4
    %v293 = vadd.f32 %v291, %v292
    %v294 = vrot.slane %v293, 2
    %v295 = vadd.f32 %v293, %v294
    %v296 = vrot.slane %v295, 1
    %v297 = vadd.f32 %v295, %v296
    %v298 = vrcp.pop %v297
    %v299 = vmul.f32 %v290, %v298
    %v300 = vpack.c.bf16 %v299, %v299
    %vm301 = vcmask 60416
    %302 = vst.msk [vmem:[#allocation8] sm:$0xf] %vm301, %v300
    %304 = vrot.lane.b32.xlu0 %v167, 112
    %v305 = vpop.permute.xlu0 %304
    %307 = vrot.lane.b32.xlu0 %v231, 112
    %v308 = vpop.permute.xlu0 %307
    %v310 = vsel %vm232, %v305, 0
    %v313 = vsel %vm232, %v308, 0
    %315 = vmatprep.subr.bf16.mxu0 0
    %316 = vmatpush1.bf16.xpose.msra.mxu0 0
    %317 = vmatprep.subr.bf16.mxu0 0
    %318 = vmatpush1.bf16.xpose.msra.mxu0 0
    %319 = vmatprep.subr.bf16.mxu0 0
    %320 = vmatpush1.bf16.xpose.msra.mxu0 0
    %321 = vmatprep.subr.bf16.mxu0 0
    %322 = vmatpush1.bf16.xpose.msra.mxu0 0
    %323 = vmatprep.subr.bf16.mxu0 0
    %324 = vmatpush1.bf16.xpose.msra.mxu0 0
    %325 = vmatprep.subr.bf16.mxu0 0
    %326 = vmatpush1.bf16.xpose.msra.mxu0 0
    %327 = vmatprep.subr.bf16.mxu0 0
    %328 = vmatpush1.bf16.xpose.msra.mxu0 0
    %329 = vmatprep.subr.bf16.mxu0 0
    %330 = vmatpush1.bf16.xpose.msra.mxu0 %v313
    %331 = vmatprep.subr.bf16.mxu0 0
    %332 = vmatpush2.bf16.xpose.msra.mxu0 0
    %333 = vmatprep.subr.bf16.mxu0 0
    %334 = vmatpush2.bf16.xpose.msra.mxu0 0
    %335 = vmatprep.subr.bf16.mxu0 0
    %336 = vmatpush2.bf16.xpose.msra.mxu0 0
    %337 = vmatprep.subr.bf16.mxu0 0
    %338 = vmatpush2.bf16.xpose.msra.mxu0 0
    %339 = vmatprep.subr.bf16.mxu0 0
    %340 = vmatpush2.bf16.xpose.msra.mxu0 0
    %341 = vmatprep.subr.bf16.mxu0 0
    %342 = vmatpush2.bf16.xpose.msra.mxu0 0
    %343 = vmatprep.subr.bf16.mxu0 0
    %344 = vmatpush2.bf16.xpose.msra.mxu0 0
    %345 = vmatprep.subr.bf16.mxu0 0
    %346 = vmatpush2.bf16.xpose.msra.mxu0 0
    %347 = vmatprep.mubr.bf16.mxu0 0
    %348 = vmatmul.mubr.bf16.gmra.mxu0 %v310
    %v349 = vpop.f32.mrf.mxu0
    %v350 = vadd.f32 0.0, %v349
    %v351 = vpop.f32.mrf.mxu0
    %v352 = vpop.f32.mrf.mxu0
    %v353 = vpop.f32.mrf.mxu0
    %354 = vdwg.mxu0
    %v355 = vmul.f32 %v350, 0.25
    %v356 = vsel %vm280, %v355, -inf
    %v357 = vrot.slane %v356, 4
    %v358 = vmax.f32 %v356, %v357
    %v359 = vrot.slane %v358, 2
    %v360 = vmax.f32 %v358, %v359
    %v361 = vrot.slane %v360, 1
    %v362 = vmax.f32 %v360, %v361
    %v363 = vsub.f32 %v355, %v362
    %v364 = vmul.f32 %v363, 1.442695
    %v365 = vpow.pop %v364
    %v366 = vsel %vm280, %v365, 0.0
    %v367 = vrot.slane %v366, 4
    %v368 = vadd.f32 %v366, %v367
    %v369 = vrot.slane %v368, 2
    %v370 = vadd.f32 %v368, %v369
    %v371 = vrot.slane %v370, 1
    %v372 = vadd.f32 %v370, %v371
    %v373 = vrcp.pop %v372
    %v374 = vmul.f32 %v365, %v373
    %v375 = vpack.c.bf16 %v374, %v374
    %s376 = scalar_lea.vmem [#allocation8], 4
    %377 = vst.msk [vmem:[%s376] sm:$0xf] %vm301, %v375
    // Predicated region
    $region42: #{tpu_custom_call.1} parent=1 // pred_check
      _
    $region43: #{tpu_custom_call.1} parent=1 // pred_check_branch
      %379 = sbr.rel (0) target = $region45
    $region44: #{tpu_custom_call.1} parent=1 // pred_region
      %s381 = ssub.s32 128, 128
      %382 = vsyncadd [#allocation4], %s381
      %s383 = sshll.u32 [#allocation8], 4
      %s384 = int_to_ptr.vmem [resolvable:$true] %s383
      %389 = dma.vmem_to_hbm [thread:$0]  %s384, 128, %s7, [#allocation4], 64, 64, 4
    $region45: #{tpu_custom_call.1} parent=1 // pred_fallthru
      _
    // Predicated region
    $region46: #{tpu_custom_call.1} parent=1 // pred_check
      _
    $region47: #{tpu_custom_call.1} parent=1 // pred_check_branch
      %391 = sbr.rel (0) target = $region49
    $region48: #{tpu_custom_call.1} parent=1 // pred_region
      %392 = dma.done [#allocation4], 128
    $region49: #{tpu_custom_call.1} parent=1 // pred_fallthru
      _
    %393 = vsyncpa [#allocation3], 1
    %394 = vsyncpa [#allocation6], 1
    %395 = vsyncpa [#allocation4], 1

</llo_original>
